<compile_context>
chip_gen: v7x
topology: tpu7x:2x2x1
jax: 0.10.0
libtpu: 0.0.40
codegen_flags: <defaults>
</compile_context>

<pallas_src>
import jax
import jax.numpy as jnp
from jax.experimental import pallas as pl
from jax.experimental.pallas import tpu as pltpu

HIDDEN = 1024      # encoder / discriminator hidden width (fixed by the module)
CLF_HIDDEN = 128   # predictor hidden width (fixed by the module)
_NEG_BIG = -1e30   # bias for zero-weight padding columns (exp underflows to 0)


def _round_up(a, m):
    return (a + m - 1) // m * m


def _leaky_relu(v):
    # LeakyReLU(negative_slope=0.01) as a single vmax per vreg.
    return jnp.maximum(v, 0.01 * v)


def _dann_kernel(x_ref,
                 w1_ref, b1_ref, w2_ref, b2_ref,        # encoder
                 wh1_ref, bh1_ref,                      # fused head L1 (clf | dis)
                 wc2_ref, bc2_ref,                      # predictor L2 (lane-padded)
                 wd2_ref, bd2_ref,                      # discriminator L2 (f32 row)
                 clf_ref, dis_ref):
    # ---- encoder: Linear(inp,1024) -> LeakyReLU -> Dropout(id) -> Linear(1024,emb) -> ELU
    x = x_ref[...].astype(w1_ref.dtype)                 # in-kernel f32 -> bf16 cast
    h = jnp.dot(x, w1_ref[...], preferred_element_type=jnp.float32) + b1_ref[...]
    h = _leaky_relu(h)
    # TODO(synk): Dropout(p=0.5) is eval-mode identity here; training mode would
    # need a pltpu.prng_random_bits mask (torch RNG cannot be reproduced exactly).
    z = jnp.dot(h.astype(w2_ref.dtype), w2_ref[...],
                preferred_element_type=jnp.float32) + b2_ref[...]
    emb = jnp.maximum(z, 0.0) + (jnp.exp(jnp.minimum(z, 0.0)) - 1.0)   # ELU(alpha=1)
    emb_lo = emb.astype(wh1_ref.dtype)                  # bf16 for the head GEMM

    # ---- fused head L1: one GEMM over concat([wc1, wd1]) -> (tb, 128+1024)
    cd = jnp.dot(emb_lo, wh1_ref[...], preferred_element_type=jnp.float32) + bh1_ref[...]
    c = cd[:, :CLF_HIDDEN]                              # predictor hidden (tb, 128)
    d = _leaky_relu(cd[:, CLF_HIDDEN:])                 # discriminator hidden (tb, 1024)

    # ---- predictor L2 + log_softmax over a lane-dense (-1e30 padded) width.
    logits = jnp.dot(c.astype(wc2_ref.dtype), wc2_ref[...],
                     preferred_element_type=jnp.float32) + bc2_ref[...]
    m = jnp.max(logits, axis=-1, keepdims=True)
    lse = jnp.log(jnp.sum(jnp.exp(logits - m), axis=-1, keepdims=True)) + m
    clf_ref[...] = (logits - lse).astype(clf_ref.dtype)

    # ---- discriminator L2 (grad_reverse is identity in forward):
    #      N=1 output -> VPU multiply + row reduce (off the MXU), broadcast
    #      across 128 lanes so the store is lane-dense.
    dval = jnp.sum(d * wd2_ref[...], axis=-1, keepdims=True) + bd2_ref[...]
    dis_ref[...] = jnp.broadcast_to(dval, dis_ref.shape).astype(dis_ref.dtype)


def _vmem_budget():
    """Generation-aware VMEM limit (85% of physical) and batch-tile cap."""
    try:
        phys = int(pltpu.get_tpu_info().vmem_capacity_bytes)
    except Exception:
        phys = 64 * 1024 * 1024            # conservative (v7x-sized) fallback
    vmem_bytes = int(phys * 0.85)          # ~54 MiB on v7x, ~109 MiB on v5e/v6e
    tb_cap = 1024 if phys >= 100 * 1024 * 1024 else 512
    return vmem_bytes, tb_cap


def pack_dann_params(w1, b1, w2, b2, wc1, bc1, wc2, bc2, wd1, bd1, wd2, bd2):
    """One-time host-side packing of torch-layout (out,in) f32 weights."""
    ncls = wc2.shape[0]
    cw = _round_up(ncls, 128)              # lane-dense clf output width

    def wT(w):
        return jnp.asarray(w, jnp.float32).T.astype(jnp.bfloat16)

    def row(b):
        return jnp.asarray(b, jnp.float32).reshape(1, -1)

    # Fused head-L1 weight/bias: predictor L1 (emb,128) || discriminator L1 (emb,1024)
    wh1 = jnp.concatenate([wT(wc1), wT(wd1)], axis=1)           # (emb, 1152) bf16
    bh1 = jnp.concatenate([row(bc1), row(bd1)], axis=1)         # (1, 1152)   f32

    # Predictor L2 padded to a lane-dense width; padded bias ~ -inf so the
    # in-kernel full-width log_softmax equals log_softmax over the real cols.
    wc2_p = jnp.zeros((CLF_HIDDEN, cw), jnp.bfloat16).at[:, :ncls].set(wT(wc2))
    bc2_p = jnp.full((1, cw), _NEG_BIG, jnp.float32).at[:, :ncls].set(row(bc2))

    # Discriminator L2 kept f32: used by a VPU multiply + row-reduce.
    wd2_row = jnp.asarray(wd2, jnp.float32).reshape(1, HIDDEN)
    bd2_s = jnp.asarray(bd2, jnp.float32).reshape(1, 1)

    weights = (wT(w1), row(b1), wT(w2), row(b2),
               wh1, bh1, wc2_p, bc2_p, wd2_row, bd2_s)
    return dict(weights=weights, ncls=ncls, cw=cw)


def dann_forward(x, packed, *, tb=None):
    """Fused eval-mode DANN forward.

    x: (B, inp_dim) float32; packed: output of pack_dann_params.
    Returns (x_clf (B, ncls) log-softmax, x_dis (B, 1) domain logit), both f32.
    """
    weights = packed["weights"]
    ncls, cw = packed["ncls"], packed["cw"]
    w1_t, w2_t = weights[0], weights[2]

    B, inp_dim = x.shape
    emb_dim = w2_t.shape[1]
    x = x.astype(jnp.float32)              # no padded/bf16 copy is materialized

    vmem_bytes, tb_cap = _vmem_budget()
    if tb is None:
        # >= 2 grid steps whenever B allows (v7x megacore), capped per generation.
        tb = min(tb_cap, _round_up(max(1, -(-B // 2)), 8))
        # Clip so the per-tile VMEM footprint stays inside the budget (matters
        # only for very large inp_dim; residents are double-buffered by Pallas).
        resident_bytes = 2 * sum(int(a.size) * a.dtype.itemsize for a in weights)
        row_bytes = (2 * 4 * inp_dim + 2 * inp_dim
                     + 4 * (3 * HIDDEN + emb_dim + CLF_HIDDEN)
                     + 2 * 4 * (cw + 128))
        budget = int(vmem_bytes * 0.7) - resident_bytes
        if budget > 0:
            tb = min(tb, max(8, (budget // row_bytes) // 8 * 8))
    tb = max(8, _round_up(tb, 8))

    grid = (pl.cdiv(B, tb),)               # ragged grid; partial tail block is masked

    def batch_spec(cols):
        return pl.BlockSpec((tb, cols), lambda i: (i, 0))

    def resident_spec(arr):
        # Constant block index: DMA'd once, stays resident in VMEM across grid.
        return pl.BlockSpec(arr.shape, lambda i: (0, 0))

    in_specs = [batch_spec(inp_dim)] + [resident_spec(a) for a in weights]
    out_specs = (batch_spec(cw), batch_spec(128))
    out_shape = (jax.ShapeDtypeStruct((B, cw), jnp.float32),
                 jax.ShapeDtypeStruct((B, 128), jnp.float32))

    flops = 2 * B * (inp_dim * HIDDEN + HIDDEN * emb_dim
                     + emb_dim * (CLF_HIDDEN + HIDDEN)
                     + CLF_HIDDEN * cw + HIDDEN)
    transcendentals = B * (emb_dim + cw)
    bytes_accessed = (int(x.size) * 4
                      + sum(int(a.size) * a.dtype.itemsize for a in weights)
                      + B * (cw + 128) * 4)

    clf_out, dis_out = pl.pallas_call(
        _dann_kernel,
        out_shape=out_shape,
        grid=grid,
        in_specs=in_specs,
        out_specs=out_specs,
        compiler_params=pltpu.CompilerParams(
            dimension_semantics=("parallel",),      # v7x: shard batch over 2 TCs
            vmem_limit_bytes=vmem_bytes,
        ),
        cost_estimate=pl.CostEstimate(flops=flops,
                                      transcendentals=transcendentals,
                                      bytes_accessed=bytes_accessed),
    )(x, *weights)

    return clf_out[:, :ncls], dis_out[:, :1]


# ----------------------------------------------------------------------------
# Pure-JAX reference (same mixed-precision contract: bf16 MXU inputs, f32 acc,
# f32 discriminator output layer).
# ----------------------------------------------------------------------------
def dann_forward_ref(x, enc_params, clf_params, dis_params):
    w1, b1, w2, b2 = enc_params
    wc1, bc1, wc2, bc2 = clf_params
    wd1, bd1, wd2, bd2 = dis_params

    def bt(w):
        return w.T.astype(jnp.bfloat16)

    xb = x.astype(jnp.bfloat16)
    h = jnp.dot(xb, bt(w1), preferred_element_type=jnp.float32) + b1
    h = jnp.maximum(h, 0.01 * h)
    z = jnp.dot(h.astype(jnp.bfloat16), bt(w2), preferred_element_type=jnp.float32) + b2
    emb = jnp.maximum(z, 0.0) + jnp.expm1(jnp.minimum(z, 0.0))   # true ELU
    emb_lo = emb.astype(jnp.bfloat16)

    c = jnp.dot(emb_lo, bt(wc1), preferred_element_type=jnp.float32) + bc1
    logits = jnp.dot(c.astype(jnp.bfloat16), bt(wc2), preferred_element_type=jnp.float32) + bc2
    x_clf = jax.nn.log_softmax(logits, axis=1)

    d = jnp.dot(emb_lo, bt(wd1), preferred_element_type=jnp.float32) + bd1
    d = jnp.maximum(d, 0.01 * d)
    x_dis = jnp.dot(d, wd2.T.astype(jnp.float32),
                    preferred_element_type=jnp.float32) + bd2
    return x_clf, x_dis


def _torch_linear_init(key, fan_in, fan_out):
    """torch.nn.Linear default init: U(-1/sqrt(fan_in), 1/sqrt(fan_in))."""
    kw, kb = jax.random.split(key)
    bound = 1.0 / jnp.sqrt(jnp.float32(fan_in))
    w = jax.random.uniform(kw, (fan_out, fan_in), jnp.float32, -bound, bound)
    b = jax.random.uniform(kb, (fan_out,), jnp.float32, -bound, bound)
    return w, b


if __name__ == "__main__":
    key = jax.random.PRNGKey(0)
    ks = jax.random.split(key, 7)

    # Small shapes consistent with the module (hidden widths fixed at 1024/128).
    B, inp_dim, emb_dim, ncls = 4, 32, 32, 16

    x = jax.random.normal(ks[0], (B, inp_dim), jnp.float32)

    w1, b1 = _torch_linear_init(ks[1], inp_dim, HIDDEN)        # encoder L1
    w2, b2 = _torch_linear_init(ks[2], HIDDEN, emb_dim)        # encoder L2
    wc1, bc1 = _torch_linear_init(ks[3], emb_dim, CLF_HIDDEN)  # predictor L1
    wc2, bc2 = _torch_linear_init(ks[4], CLF_HIDDEN, ncls)     # predictor L2
    wd1, bd1 = _torch_linear_init(ks[5], emb_dim, HIDDEN)      # discriminator L1
    wd2, bd2 = _torch_linear_init(ks[6], HIDDEN, 1)            # discriminator L2

    packed = pack_dann_params(w1, b1, w2, b2, wc1, bc1, wc2, bc2, wd1, bd1, wd2, bd2)

    x_clf, x_dis = dann_forward(x, packed)
    x_clf, x_dis = jax.block_until_ready((x_clf, x_dis))

    ref_clf, ref_dis = dann_forward_ref(
        x, (w1, b1, w2, b2), (wc1, bc1, wc2, bc2), (wd1, bd1, wd2, bd2))

    assert x_clf.shape == (B, ncls) and x_dis.shape == (B, 1)
    assert bool(jnp.all(jnp.isfinite(x_clf))) and bool(jnp.all(jnp.isfinite(x_dis)))
    assert jnp.allclose(x_clf, ref_clf, atol=5e-4, rtol=5e-4), \
        f"clf mismatch: {jnp.max(jnp.abs(x_clf - ref_clf))}"
    assert jnp.allclose(x_dis, ref_dis, atol=5e-4, rtol=5e-4), \
        f"dis mismatch: {jnp.max(jnp.abs(x_dis - ref_dis))}"

    print("KERNEL_OK")
</pallas_src>

<mosaic_0001>
module attributes {stable_mosaic.version = 11 : i64} {
  func.func @_dann_kernel(%arg0: i32, %arg1: memref<8x32xf32, #tpu.memory_space<vmem>>, %arg2: memref<32x1024xbf16, #tpu.memory_space<vmem>>, %arg3: memref<1x1024xf32, #tpu.memory_space<vmem>>, %arg4: memref<1024x32xbf16, #tpu.memory_space<vmem>>, %arg5: memref<1x32xf32, #tpu.memory_space<vmem>>, %arg6: memref<32x1152xbf16, #tpu.memory_space<vmem>>, %arg7: memref<1x1152xf32, #tpu.memory_space<vmem>>, %arg8: memref<128x128xbf16, #tpu.memory_space<vmem>>, %arg9: memref<1x128xf32, #tpu.memory_space<vmem>>, %arg10: memref<1x1024xf32, #tpu.memory_space<vmem>>, %arg11: memref<1x1xf32, #tpu.memory_space<vmem>>, %arg12: memref<8x128xf32, #tpu.memory_space<vmem>>, %arg13: memref<8x128xf32, #tpu.memory_space<vmem>>) attributes {dimension_semantics = [#tpu.dimension_semantics<parallel>], iteration_bounds = array<i64: 1>, scalar_prefetch = 0 : i64, scratch_operands = 0 : i64, tpu.core_type = #tpu.core_type<tc>, window_params = [{transform_indices = @transform_0, window_bounds = array<i64: 8, 32>}, {pipeline_mode = #tpu.pipeline_mode<synchronous>, transform_indices = @transform_1, window_bounds = array<i64: 32, 1024>}, {pipeline_mode = #tpu.pipeline_mode<synchronous>, transform_indices = @transform_2, window_bounds = array<i64: 1, 1024>}, {pipeline_mode = #tpu.pipeline_mode<synchronous>, transform_indices = @transform_3, window_bounds = array<i64: 1024, 32>}, {pipeline_mode = #tpu.pipeline_mode<synchronous>, transform_indices = @transform_4, window_bounds = array<i64: 1, 32>}, {pipeline_mode = #tpu.pipeline_mode<synchronous>, transform_indices = @transform_5, window_bounds = array<i64: 32, 1152>}, {pipeline_mode = #tpu.pipeline_mode<synchronous>, transform_indices = @transform_6, window_bounds = array<i64: 1, 1152>}, {pipeline_mode = #tpu.pipeline_mode<synchronous>, transform_indices = @transform_7, window_bounds = array<i64: 128, 128>}, {pipeline_mode = #tpu.pipeline_mode<synchronous>, transform_indices = @transform_8, window_bounds = array<i64: 1, 128>}, {pipeline_mode = #tpu.pipeline_mode<synchronous>, transform_indices = @transform_9, window_bounds = array<i64: 1, 1024>}, {pipeline_mode = #tpu.pipeline_mode<synchronous>, transform_indices = @transform_10, window_bounds = array<i64: 1, 1>}, {transform_indices = @transform_11, window_bounds = array<i64: 8, 128>}, {transform_indices = @transform_12, window_bounds = array<i64: 8, 128>}]} {
    %c0 = arith.constant 0 : index
    %c0_0 = arith.constant 0 : index
    %0 = vector.load %arg1[%c0, %c0_0] : memref<8x32xf32, #tpu.memory_space<vmem>>, vector<8x32xf32>
    %1 = arith.truncf %0 : vector<8x32xf32> to vector<8x32xbf16>
    %c0_1 = arith.constant 0 : index
    %c0_2 = arith.constant 0 : index
    %2 = vector.load %arg2[%c0_1, %c0_2] : memref<32x1024xbf16, #tpu.memory_space<vmem>>, vector<32x1024xbf16>
    %cst = arith.constant dense<0.000000e+00> : vector<8x1024xf32>
    %3 = tpu.matmul %1, %2, %cst {dimension_numbers = #tpu.dot_dimension_numbers<[1], [0], [0], [1], [0, 0, 1, 1], [], []>} : vector<8x32xbf16>, vector<32x1024xbf16>, vector<8x1024xf32> -> vector<8x1024xf32>
    %c0_3 = arith.constant 0 : index
    %c0_4 = arith.constant 0 : index
    %4 = vector.load %arg3[%c0_3, %c0_4] : memref<1x1024xf32, #tpu.memory_space<vmem>>, vector<1x1024xf32>
    %5 = vector.broadcast %4 : vector<1x1024xf32> to vector<8x1024xf32>
    %6 = arith.addf %3, %5 : vector<8x1024xf32>
    %cst_5 = arith.constant 0.00999999977 : f32
    %7 = vector.broadcast %cst_5 : f32 to vector<8x1024xf32>
    %8 = arith.mulf %7, %6 : vector<8x1024xf32>
    %9 = arith.maximumf %6, %8 : vector<8x1024xf32>
    %10 = arith.truncf %9 : vector<8x1024xf32> to vector<8x1024xbf16>
    %c0_6 = arith.constant 0 : index
    %c0_7 = arith.constant 0 : index
    %11 = vector.load %arg4[%c0_6, %c0_7] : memref<1024x32xbf16, #tpu.memory_space<vmem>>, vector<1024x32xbf16>
    %cst_8 = arith.constant dense<0.000000e+00> : vector<8x32xf32>
    %12 = tpu.matmul %10, %11, %cst_8 {dimension_numbers = #tpu.dot_dimension_numbers<[1], [0], [0], [1], [0, 0, 1, 1], [], []>} : vector<8x1024xbf16>, vector<1024x32xbf16>, vector<8x32xf32> -> vector<8x32xf32>
    %c0_9 = arith.constant 0 : index
    %c0_10 = arith.constant 0 : index
    %13 = vector.load %arg5[%c0_9, %c0_10] : memref<1x32xf32, #tpu.memory_space<vmem>>, vector<1x32xf32>
    %14 = vector.broadcast %13 : vector<1x32xf32> to vector<8x32xf32>
    %15 = arith.addf %12, %14 : vector<8x32xf32>
    %cst_11 = arith.constant 0.000000e+00 : f32
    %16 = vector.broadcast %cst_11 : f32 to vector<8x32xf32>
    %17 = arith.maximumf %15, %16 : vector<8x32xf32>
    %cst_12 = arith.constant 0.000000e+00 : f32
    %18 = vector.broadcast %cst_12 : f32 to vector<8x32xf32>
    %19 = arith.minimumf %15, %18 : vector<8x32xf32>
    %20 = math.exp %19 : vector<8x32xf32>
    %cst_13 = arith.constant 1.000000e+00 : f32
    %21 = vector.broadcast %cst_13 : f32 to vector<8x32xf32>
    %22 = arith.subf %20, %21 : vector<8x32xf32>
    %23 = arith.addf %17, %22 : vector<8x32xf32>
    %24 = arith.truncf %23 : vector<8x32xf32> to vector<8x32xbf16>
    %c0_14 = arith.constant 0 : index
    %c0_15 = arith.constant 0 : index
    %25 = vector.load %arg6[%c0_14, %c0_15] : memref<32x1152xbf16, #tpu.memory_space<vmem>>, vector<32x1152xbf16>
    %cst_16 = arith.constant dense<0.000000e+00> : vector<8x1152xf32>
    %26 = tpu.matmul %24, %25, %cst_16 {dimension_numbers = #tpu.dot_dimension_numbers<[1], [0], [0], [1], [0, 0, 1, 1], [], []>} : vector<8x32xbf16>, vector<32x1152xbf16>, vector<8x1152xf32> -> vector<8x1152xf32>
    %c0_17 = arith.constant 0 : index
    %c0_18 = arith.constant 0 : index
    %27 = vector.load %arg7[%c0_17, %c0_18] : memref<1x1152xf32, #tpu.memory_space<vmem>>, vector<1x1152xf32>
    %28 = vector.broadcast %27 : vector<1x1152xf32> to vector<8x1152xf32>
    %29 = arith.addf %26, %28 : vector<8x1152xf32>
    %30 = vector.extract_strided_slice %29 {offsets = [0, 0], sizes = [8, 128], strides = [1, 1]} : vector<8x1152xf32> to vector<8x128xf32>
    %31 = vector.extract_strided_slice %29 {offsets = [0, 128], sizes = [8, 1024], strides = [1, 1]} : vector<8x1152xf32> to vector<8x1024xf32>
    %cst_19 = arith.constant 0.00999999977 : f32
    %32 = vector.broadcast %cst_19 : f32 to vector<8x1024xf32>
    %33 = arith.mulf %32, %31 : vector<8x1024xf32>
    %34 = arith.maximumf %31, %33 : vector<8x1024xf32>
    %35 = arith.truncf %30 : vector<8x128xf32> to vector<8x128xbf16>
    %c0_20 = arith.constant 0 : index
    %c0_21 = arith.constant 0 : index
    %36 = vector.load %arg8[%c0_20, %c0_21] : memref<128x128xbf16, #tpu.memory_space<vmem>>, vector<128x128xbf16>
    %cst_22 = arith.constant dense<0.000000e+00> : vector<8x128xf32>
    %37 = tpu.matmul %35, %36, %cst_22 {dimension_numbers = #tpu.dot_dimension_numbers<[1], [0], [0], [1], [0, 0, 1, 1], [], []>} : vector<8x128xbf16>, vector<128x128xbf16>, vector<8x128xf32> -> vector<8x128xf32>
    %c0_23 = arith.constant 0 : index
    %c0_24 = arith.constant 0 : index
    %38 = vector.load %arg9[%c0_23, %c0_24] : memref<1x128xf32, #tpu.memory_space<vmem>>, vector<1x128xf32>
    %39 = vector.broadcast %38 : vector<1x128xf32> to vector<8x128xf32>
    %40 = arith.addf %37, %39 : vector<8x128xf32>
    %cst_25 = arith.constant dense<0xFF800000> : vector<8xf32>
    %41 = vector.multi_reduction <maximumf>, %40, %cst_25 [1] : vector<8x128xf32> to vector<8xf32>
    %42 = vector.shape_cast %41 : vector<8xf32> to vector<8x1xf32>
    %43 = vector.broadcast %42 : vector<8x1xf32> to vector<8x128xf32>
    %44 = arith.subf %40, %43 : vector<8x128xf32>
    %45 = math.exp %44 : vector<8x128xf32>
    %cst_26 = arith.constant dense<0.000000e+00> : vector<8xf32>
    %46 = vector.multi_reduction <add>, %45, %cst_26 [1] : vector<8x128xf32> to vector<8xf32>
    %47 = vector.shape_cast %46 : vector<8xf32> to vector<8x1xf32>
    %48 = math.log %47 : vector<8x1xf32>
    %49 = arith.addf %48, %42 : vector<8x1xf32>
    %50 = vector.broadcast %49 : vector<8x1xf32> to vector<8x128xf32>
    %51 = arith.subf %40, %50 : vector<8x128xf32>
    %c0_27 = arith.constant 0 : index
    %c0_28 = arith.constant 0 : index
    %52 = vector.load %arg12[%c0_27, %c0_28] : memref<8x128xf32, #tpu.memory_space<vmem>>, vector<8x128xf32>
    tpu.vector_store %arg12[%c0_27, %c0_28], %51 {strides = array<i32>} : memref<8x128xf32, #tpu.memory_space<vmem>>, vector<8x128xf32>,
    %c0_29 = arith.constant 0 : index
    %c0_30 = arith.constant 0 : index
    %53 = vector.load %arg10[%c0_29, %c0_30] : memref<1x1024xf32, #tpu.memory_space<vmem>>, vector<1x1024xf32>
    %54 = vector.broadcast %53 : vector<1x1024xf32> to vector<8x1024xf32>
    %55 = arith.mulf %34, %54 : vector<8x1024xf32>
    %cst_31 = arith.constant dense<0.000000e+00> : vector<8xf32>
    %56 = vector.multi_reduction <add>, %55, %cst_31 [1] : vector<8x1024xf32> to vector<8xf32>
    %57 = vector.shape_cast %56 : vector<8xf32> to vector<8x1xf32>
    %c0_32 = arith.constant 0 : index
    %c0_33 = arith.constant 0 : index
    %58 = vector.load %arg11[%c0_32, %c0_33] : memref<1x1xf32, #tpu.memory_space<vmem>>, vector<1x1xf32>
    %59 = vector.broadcast %58 : vector<1x1xf32> to vector<8x1xf32>
    %60 = arith.addf %57, %59 : vector<8x1xf32>
    %61 = vector.shape_cast %60 : vector<8x1xf32> to vector<8x1xf32>
    %62 = vector.broadcast %61 : vector<8x1xf32> to vector<8x128xf32>
    %c0_34 = arith.constant 0 : index
    %c0_35 = arith.constant 0 : index
    %63 = vector.load %arg13[%c0_34, %c0_35] : memref<8x128xf32, #tpu.memory_space<vmem>>, vector<8x128xf32>
    tpu.vector_store %arg13[%c0_34, %c0_35], %62 {strides = array<i32>} : memref<8x128xf32, #tpu.memory_space<vmem>>, vector<8x128xf32>,
    return
  }
  func.func @transform_0(%arg0: i32) -> (i32, i32) {
    %c0_i32 = arith.constant 0 : i32
    %c0_i32_0 = arith.constant 0 : i32
    return %arg0, %c0_i32 : i32, i32
  }
  func.func @transform_1(%arg0: i32) -> (i32, i32) {
    %c0_i32 = arith.constant 0 : i32
    %c0_i32_0 = arith.constant 0 : i32
    %c0_i32_1 = arith.constant 0 : i32
    return %c0_i32, %c0_i32_0 : i32, i32
  }
  func.func @transform_2(%arg0: i32) -> (i32, i32) {
    %c0_i32 = arith.constant 0 : i32
    %c0_i32_0 = arith.constant 0 : i32
    %c0_i32_1 = arith.constant 0 : i32
    return %c0_i32, %c0_i32_0 : i32, i32
  }
  func.func @transform_3(%arg0: i32) -> (i32, i32) {
    %c0_i32 = arith.constant 0 : i32
    %c0_i32_0 = arith.constant 0 : i32
    %c0_i32_1 = arith.constant 0 : i32
    return %c0_i32, %c0_i32_0 : i32, i32
  }
  func.func @transform_4(%arg0: i32) -> (i32, i32) {
    %c0_i32 = arith.constant 0 : i32
    %c0_i32_0 = arith.constant 0 : i32
    %c0_i32_1 = arith.constant 0 : i32
    return %c0_i32, %c0_i32_0 : i32, i32
  }
  func.func @transform_5(%arg0: i32) -> (i32, i32) {
    %c0_i32 = arith.constant 0 : i32
    %c0_i32_0 = arith.constant 0 : i32
    %c0_i32_1 = arith.constant 0 : i32
    return %c0_i32, %c0_i32_0 : i32, i32
  }
  func.func @transform_6(%arg0: i32) -> (i32, i32) {
    %c0_i32 = arith.constant 0 : i32
    %c0_i32_0 = arith.constant 0 : i32
    %c0_i32_1 = arith.constant 0 : i32
    return %c0_i32, %c0_i32_0 : i32, i32
  }
  func.func @transform_7(%arg0: i32) -> (i32, i32) {
    %c0_i32 = arith.constant 0 : i32
    %c0_i32_0 = arith.constant 0 : i32
    %c0_i32_1 = arith.constant 0 : i32
    return %c0_i32, %c0_i32_0 : i32, i32
  }
  func.func @transform_8(%arg0: i32) -> (i32, i32) {
    %c0_i32 = arith.constant 0 : i32
    %c0_i32_0 = arith.constant 0 : i32
    %c0_i32_1 = arith.constant 0 : i32
    return %c0_i32, %c0_i32_0 : i32, i32
  }
  func.func @transform_9(%arg0: i32) -> (i32, i32) {
    %c0_i32 = arith.constant 0 : i32
    %c0_i32_0 = arith.constant 0 : i32
    %c0_i32_1 = arith.constant 0 : i32
    return %c0_i32, %c0_i32_0 : i32, i32
  }
  func.func @transform_10(%arg0: i32) -> (i32, i32) {
    %c0_i32 = arith.constant 0 : i32
    %c0_i32_0 = arith.constant 0 : i32
    %c0_i32_1 = arith.constant 0 : i32
    return %c0_i32, %c0_i32_0 : i32, i32
  }
  func.func @transform_11(%arg0: i32) -> (i32, i32) {
    %c0_i32 = arith.constant 0 : i32
    %c0_i32_0 = arith.constant 0 : i32
    return %arg0, %c0_i32 : i32, i32
  }
  func.func @transform_12(%arg0: i32) -> (i32, i32) {
    %c0_i32 = arith.constant 0 : i32
    %c0_i32_0 = arith.constant 0 : i32
    return %arg0, %c0_i32 : i32, i32
  }
}

</mosaic_0001>

<llo_original>
// kernel: tpu_custom_call.1
$region0: #{tpu_custom_call.1}
  #allocation0 [shape = 'u32[]', space=smem, size = 0x4, offset = 0x4, fixed_abs, tag = 'smem constant byte address 0x4 - core index']
  #allocation1 [shape = 'u32[144,128]{1,0:T(1,128)}', space=vmem, size = 0x12000, scoped, tag = 'internal scratch']
  #allocation2 [shape = 'f32[1,1]{1,0:T(1,128)S(1)}', space=vmem, size = 0x200, scoped, tag = 'scoped memory for tpu_custom_call.1']
  %s0 = inlined_call_operand.vmem [shape: f32[4,32], index: 0, kind: input, shape index: {}]
  %s1 = inlined_call_operand.vmem [shape: bf16[32,1024], index: 1, kind: input, shape index: {}]
  %s2 = inlined_call_operand.vmem [shape: f32[1,1024], index: 2, kind: input, shape index: {}]
  %s3 = inlined_call_operand.vmem [shape: bf16[1024,32], index: 3, kind: input, shape index: {}]
  %s4 = inlined_call_operand.vmem [shape: f32[1,32], index: 4, kind: input, shape index: {}]
  %s5 = inlined_call_operand.vmem [shape: bf16[32,1152], index: 5, kind: input, shape index: {}]
  %s6 = inlined_call_operand.vmem [shape: f32[1,1152], index: 6, kind: input, shape index: {}]
  %s7 = inlined_call_operand.vmem [shape: bf16[128,128], index: 7, kind: input, shape index: {}]
  %s8 = inlined_call_operand.vmem [shape: f32[1,128], index: 8, kind: input, shape index: {}]
  %s9 = inlined_call_operand.vmem [shape: f32[1,1024], index: 9, kind: input, shape index: {}]
  %s10 = inlined_call_operand.<no memory space> [shape: f32[1,1], index: 10, kind: input, shape index: {}]
  %s11 = inlined_call_operand.hbm [shape: f32[4,128], index: 11, kind: output, shape index: {0}]
  %s12 = inlined_call_operand.hbm [shape: f32[4,128], index: 12, kind: output, shape index: {1}]
  %13 = xla_tuple %s11, %s12
  %s14 = sld [smem:[#allocation0]]
  $region62: #{tpu_custom_call.1} parent=0
    _
  %s16 = ssub.s32 1, %s14
  %s17 = scalar_select 0, %s16, %s14
  %v18 = vstv %s10
  %19 = vst [vmem:[#allocation2] sm:$0x1] %v18
  $region1: #{tpu_custom_call.1} parent=0
    #allocation3 [shape = 'u8[4096]{0}', space=vmem, size = 0x1000, scoped, tag = 'output window, operand 0, single buffered']
    #allocation4 [shape = 's32[1]{0}', space=sflag, size = 0x4, scoped, tag = 'scoped memory for tpu_custom_call.1']
    #allocation5 [shape = 'u8[4096]{0}', space=vmem, size = 0x1000, scoped, tag = 'output window, operand 1, single buffered']
    #allocation6 [shape = 's32[1]{0}', space=sflag, size = 0x4, scoped, tag = 'scoped memory for tpu_custom_call.1']
    %20 = vsyncpa [#allocation4], 0
    %21 = vsyncpa [#allocation6], 0
    // Predicated region
    $region2: #{tpu_custom_call.1} parent=1 // pred_check
      _
    $region3: #{tpu_custom_call.1} parent=1 // pred_check_branch
      %23 = sbr.rel (0) target = $region5
    $region4: #{tpu_custom_call.1} parent=1 // pred_region
      _
    $region5: #{tpu_custom_call.1} parent=1 // pred_fallthru
      _
    // Predicated region
    $region6: #{tpu_custom_call.1} parent=1 // pred_check
      _
    $region7: #{tpu_custom_call.1} parent=1 // pred_check_branch
      %25 = sbr.rel (0) target = $region9
    $region8: #{tpu_custom_call.1} parent=1 // pred_region
      _
    $region9: #{tpu_custom_call.1} parent=1 // pred_fallthru
      _
    // Predicated region
    $region10: #{tpu_custom_call.1} parent=1 // pred_check
      _
    $region11: #{tpu_custom_call.1} parent=1 // pred_check_branch
      %27 = sbr.rel (0) target = $region13
    $region12: #{tpu_custom_call.1} parent=1 // pred_region
      _
    $region13: #{tpu_custom_call.1} parent=1 // pred_fallthru
      _
    // Predicated region
    $region14: #{tpu_custom_call.1} parent=1 // pred_check
      _
    $region15: #{tpu_custom_call.1} parent=1 // pred_check_branch
      %29 = sbr.rel (0) target = $region17
    $region16: #{tpu_custom_call.1} parent=1 // pred_region
      _
    $region17: #{tpu_custom_call.1} parent=1 // pred_fallthru
      _
    // Predicated region
    $region18: #{tpu_custom_call.1} parent=1 // pred_check
      _
    $region19: #{tpu_custom_call.1} parent=1 // pred_check_branch
      %31 = sbr.rel (0) target = $region21
    $region20: #{tpu_custom_call.1} parent=1 // pred_region
      _
    $region21: #{tpu_custom_call.1} parent=1 // pred_fallthru
      _
    // Predicated region
    $region22: #{tpu_custom_call.1} parent=1 // pred_check
      _
    $region23: #{tpu_custom_call.1} parent=1 // pred_check_branch
      %33 = sbr.rel (0) target = $region25
    $region24: #{tpu_custom_call.1} parent=1 // pred_region
      _
    $region25: #{tpu_custom_call.1} parent=1 // pred_fallthru
      _
    // Predicated region
    $region26: #{tpu_custom_call.1} parent=1 // pred_check
      _
    $region27: #{tpu_custom_call.1} parent=1 // pred_check_branch
      %35 = sbr.rel (0) target = $region29
    $region28: #{tpu_custom_call.1} parent=1 // pred_region
      _
    $region29: #{tpu_custom_call.1} parent=1 // pred_fallthru
      _
    // Predicated region
    $region30: #{tpu_custom_call.1} parent=1 // pred_check
      _
    $region31: #{tpu_custom_call.1} parent=1 // pred_check_branch
      %37 = sbr.rel (0) target = $region33
    $region32: #{tpu_custom_call.1} parent=1 // pred_region
      _
    $region33: #{tpu_custom_call.1} parent=1 // pred_fallthru
      _
    // Predicated region
    $region34: #{tpu_custom_call.1} parent=1 // pred_check
      _
    $region35: #{tpu_custom_call.1} parent=1 // pred_check_branch
      %39 = sbr.rel (0) target = $region37
    $region36: #{tpu_custom_call.1} parent=1 // pred_region
      _
    $region37: #{tpu_custom_call.1} parent=1 // pred_fallthru
      _
    // Predicated region
    $region38: #{tpu_custom_call.1} parent=1 // pred_check
      _
    $region39: #{tpu_custom_call.1} parent=1 // pred_check_branch
      %41 = sbr.rel (0) target = $region41
    $region40: #{tpu_custom_call.1} parent=1 // pred_region
      _
    $region41: #{tpu_custom_call.1} parent=1 // pred_fallthru
      _
    // Predicated region
    $region42: #{tpu_custom_call.1} parent=1 // pred_check
      _
    $region43: #{tpu_custom_call.1} parent=1 // pred_check_branch
      %43 = sbr.rel (0) target = $region45
    $region44: #{tpu_custom_call.1} parent=1 // pred_region
      _
    $region45: #{tpu_custom_call.1} parent=1 // pred_fallthru
      _
    %v45 = vld [vmem:[%s0] sm:$0xff]
    %v46 = vpack.c.bf16 %v45, %v45
    %v47 = vld [vmem:[%s1] sm:$0xff]
    %v48 = vld [vmem:[%s1 + $0x8] sm:$0xff]
    %v49 = vld [vmem:[%s1 + $0x10] sm:$0xff]
    %v50 = vld [vmem:[%s1 + $0x18] sm:$0xff]
    %v51 = vld [vmem:[%s1 + $0x20] sm:$0xff]
    %v52 = vld [vmem:[%s1 + $0x28] sm:$0xff]
    %v53 = vld [vmem:[%s1 + $0x30] sm:$0xff]
    %v54 = vld [vmem:[%s1 + $0x38] sm:$0xff]
    %v55 = vld [vmem:[%s1 + $0x40] sm:$0xff]
    %v56 = vld [vmem:[%s1 + $0x48] sm:$0xff]
    %v57 = vld [vmem:[%s1 + $0x50] sm:$0xff]
    %v58 = vld [vmem:[%s1 + $0x58] sm:$0xff]
    %v59 = vld [vmem:[%s1 + $0x60] sm:$0xff]
    %v60 = vld [vmem:[%s1 + $0x68] sm:$0xff]
    %v61 = vld [vmem:[%s1 + $0x70] sm:$0xff]
    %v62 = vld [vmem:[%s1 + $0x78] sm:$0xff]
    %v63 = vld [vmem:[%s2] sm:$0xff]
    %v65 = vlaneseq
    %v66 = vshrl.u32 %v65, 7
    %v67 = vsub.s32 0, %v66
    %v68 = vrot.slane %v63, %v67
    %v69 = vlaneseq
    %v70 = vshrl.u32 %v69, 7
    %v71 = vsub.s32 1, %v70
    %v72 = vrot.slane %v63, %v71
    %v73 = vlaneseq
    %v74 = vshrl.u32 %v73, 7
    %v75 = vsub.s32 2, %v74
    %v76 = vrot.slane %v63, %v75
    %v77 = vlaneseq
    %v78 = vshrl.u32 %v77, 7
    %v79 = vsub.s32 3, %v78
    %v80 = vrot.slane %v63, %v79
    %v81 = vlaneseq
    %v82 = vshrl.u32 %v81, 7
    %v83 = vsub.s32 4, %v82
    %v84 = vrot.slane %v63, %v83
    %v85 = vlaneseq
    %v86 = vshrl.u32 %v85, 7
    %v87 = vsub.s32 5, %v86
    %v88 = vrot.slane %v63, %v87
    %v89 = vlaneseq
    %v90 = vshrl.u32 %v89, 7
    %v91 = vsub.s32 6, %v90
    %v92 = vrot.slane %v63, %v91
    %v93 = vlaneseq
    %v94 = vshrl.u32 %v93, 7
    %v95 = vsub.s32 7, %v94
    %v96 = vrot.slane %v63, %v95
    %v121 = vunpack.c.l.b16 %v47
    %v122 = vunpack.c.h.b16 %v47
    %v123 = vunpack.c.l.b16 %v48
    %v124 = vunpack.c.h.b16 %v48
    %v125 = vunpack.c.l.b16 %v49
    %v126 = vunpack.c.h.b16 %v49
    %v127 = vunpack.c.l.b16 %v50
    %v128 = vunpack.c.h.b16 %v50
    %v129 = vunpack.c.l.b16 %v51
    %v130 = vunpack.c.h.b16 %v51
    %v131 = vunpack.c.l.b16 %v52
    %v132 = vunpack.c.h.b16 %v52
    %v133 = vunpack.c.l.b16 %v53
    %v134 = vunpack.c.h.b16 %v53
    %v135 = vunpack.c.l.b16 %v54
    %v136 = vunpack.c.h.b16 %v54
    %v137 = vunpack.c.l.b16 %v55
    %v138 = vunpack.c.h.b16 %v55
    %v139 = vunpack.c.l.b16 %v56
    %v140 = vunpack.c.h.b16 %v56
    %v141 = vunpack.c.l.b16 %v57
    %v142 = vunpack.c.h.b16 %v57
    %v143 = vunpack.c.l.b16 %v58
    %v144 = vunpack.c.h.b16 %v58
    %v145 = vunpack.c.l.b16 %v59
    %v146 = vunpack.c.h.b16 %v59
    %v147 = vunpack.c.l.b16 %v60
    %v148 = vunpack.c.h.b16 %v60
    %v149 = vunpack.c.l.b16 %v61
    %v150 = vunpack.c.h.b16 %v61
    %v151 = vunpack.c.l.b16 %v62
    %v152 = vunpack.c.h.b16 %v62
    %v153 = vpack.c.b16 %v129, %v121
    %v154 = vpack.c.b16 %v130, %v122
    %v155 = vpack.c.b16 %v131, %v123
    %v156 = vpack.c.b16 %v132, %v124
    %v157 = vpack.c.b16 %v133, %v125
    %v158 = vpack.c.b16 %v134, %v126
    %v159 = vpack.c.b16 %v135, %v127
    %v160 = vpack.c.b16 %v136, %v128
    %v161 = vpack.c.b16 %v145, %v137
    %v162 = vpack.c.b16 %v146, %v138
    %v163 = vpack.c.b16 %v147, %v139
    %v164 = vpack.c.b16 %v148, %v140
    %v165 = vpack.c.b16 %v149, %v141
    %v166 = vpack.c.b16 %v150, %v142
    %v167 = vpack.c.b16 %v151, %v143
    %v168 = vpack.c.b16 %v152, %v144
    %vm185 = vcmask 261120
    %v187 = vsel %vm185, %v46, 0
    %189 = vmatprep.subr.bf16.mxu0 %v154
    %190 = vmatpush1.bf16.msra.mxu0 %v153
    %191 = vmatprep.subr.bf16.mxu0 %v162
    %192 = vmatpush1.bf16.msra.mxu0 %v161
    %193 = vmatprep.subr.bf16.mxu0 0
    %194 = vmatpush1.bf16.msra.mxu0 0
    %195 = vmatprep.subr.bf16.mxu0 0
    %196 = vmatpush1.bf16.msra.mxu0 0
    %197 = vmatprep.subr.bf16.mxu0 0
    %198 = vmatpush1.bf16.msra.mxu0 0
    %199 = vmatprep.subr.bf16.mxu0 0
    %200 = vmatpush1.bf16.msra.mxu0 0
    %201 = vmatprep.subr.bf16.mxu0 0
    %202 = vmatpush1.bf16.msra.mxu0 0
    %203 = vmatprep.subr.bf16.mxu0 0
    %204 = vmatpush1.bf16.msra.mxu0 0
    %205 = vmatprep.subr.bf16.mxu0 0
    %206 = vmatpush1.bf16.msra.mxu0 0
    %207 = vmatprep.subr.bf16.mxu0 0
    %208 = vmatpush1.bf16.msra.mxu0 0
    %209 = vmatprep.subr.bf16.mxu0 0
    %210 = vmatpush1.bf16.msra.mxu0 0
    %211 = vmatprep.subr.bf16.mxu0 0
    %212 = vmatpush1.bf16.msra.mxu0 0
    %213 = vmatprep.subr.bf16.mxu0 0
    %214 = vmatpush1.bf16.msra.mxu0 0
    %215 = vmatprep.subr.bf16.mxu0 0
    %216 = vmatpush1.bf16.msra.mxu0 0
    %217 = vmatprep.subr.bf16.mxu0 0
    %218 = vmatpush1.bf16.msra.mxu0 0
    %219 = vmatprep.subr.bf16.mxu0 0
    %220 = vmatpush1.bf16.msra.mxu0 0
    %221 = vmatprep.mubr.bf16.mxu0 0
    %222 = vmatmul.mubr.bf16.gmra.mrb[0].mxu0 %v187
    %v223 = vpop.f32.mrb[0].mxu0
    %v224 = vadd.f32 %v68, %v223
    %v225 = vpop.f32.mrb[0].mxu0
    %v226 = vadd.f32 %v72, %v225
    %v227 = vpop.f32.mrb[0].mxu0
    %v228 = vpop.f32.mrb[0].mxu0
    %229 = vdwg.mxu0
    %230 = vmatprep.subr.bf16.mxu0 %v156
    %231 = vmatpush1.bf16.msra.mxu0 %v155
    %232 = vmatprep.subr.bf16.mxu0 %v164
    %233 = vmatpush1.bf16.msra.mxu0 %v163
    %234 = vmatprep.subr.bf16.mxu0 0
    %235 = vmatpush1.bf16.msra.mxu0 0
    %236 = vmatprep.subr.bf16.mxu0 0
    %237 = vmatpush1.bf16.msra.mxu0 0
    %238 = vmatprep.subr.bf16.mxu0 0
    %239 = vmatpush1.bf16.msra.mxu0 0
    %240 = vmatprep.subr.bf16.mxu0 0
    %241 = vmatpush1.bf16.msra.mxu0 0
    %242 = vmatprep.subr.bf16.mxu0 0
    %243 = vmatpush1.bf16.msra.mxu0 0
    %244 = vmatprep.subr.bf16.mxu0 0
    %245 = vmatpush1.bf16.msra.mxu0 0
    %246 = vmatprep.subr.bf16.mxu0 0
    %247 = vmatpush1.bf16.msra.mxu0 0
    %248 = vmatprep.subr.bf16.mxu0 0
    %249 = vmatpush1.bf16.msra.mxu0 0
    %250 = vmatprep.subr.bf16.mxu0 0
    %251 = vmatpush1.bf16.msra.mxu0 0
    %252 = vmatprep.subr.bf16.mxu0 0
    %253 = vmatpush1.bf16.msra.mxu0 0
    %254 = vmatprep.subr.bf16.mxu0 0
    %255 = vmatpush1.bf16.msra.mxu0 0
    %256 = vmatprep.subr.bf16.mxu0 0
    %257 = vmatpush1.bf16.msra.mxu0 0
    %258 = vmatprep.subr.bf16.mxu0 0
    %259 = vmatpush1.bf16.msra.mxu0 0
    %260 = vmatprep.subr.bf16.mxu0 0
    %261 = vmatpush1.bf16.msra.mxu0 0
    %262 = vmatprep.mubr.bf16.mxu0 0
    %263 = vmatmul.mubr.bf16.gmra.mrb[0].mxu0 %v187
    %v264 = vpop.f32.mrb[0].mxu0
    %v265 = vadd.f32 %v76, %v264
    %v266 = vpop.f32.mrb[0].mxu0
    %v267 = vadd.f32 %v80, %v266
    %v268 = vpop.f32.mrb[0].mxu0
    %v269 = vpop.f32.mrb[0].mxu0
    %270 = vdwg.mxu0
    %271 = vmatprep.subr.bf16.mxu0 %v158
    %272 = vmatpush1.bf16.msra.mxu0 %v157
    %273 = vmatprep.subr.bf16.mxu0 %v166
    %274 = vmatpush1.bf16.msra.mxu0 %v165
    %275 = vmatprep.subr.bf16.mxu0 0
    %276 = vmatpush1.bf16.msra.mxu0 0
    %277 = vmatprep.subr.bf16.mxu0 0
    %278 = vmatpush1.bf16.msra.mxu0 0
    %279 = vmatprep.subr.bf16.mxu0 0
    %280 = vmatpush1.bf16.msra.mxu0 0
    %281 = vmatprep.subr.bf16.mxu0 0
    %282 = vmatpush1.bf16.msra.mxu0 0
    %283 = vmatprep.subr.bf16.mxu0 0
    %284 = vmatpush1.bf16.msra.mxu0 0
    %285 = vmatprep.subr.bf16.mxu0 0
    %286 = vmatpush1.bf16.msra.mxu0 0
    %287 = vmatprep.subr.bf16.mxu0 0
    %288 = vmatpush1.bf16.msra.mxu0 0
    %289 = vmatprep.subr.bf16.mxu0 0
    %290 = vmatpush1.bf16.msra.mxu0 0
    %291 = vmatprep.subr.bf16.mxu0 0
    %292 = vmatpush1.bf16.msra.mxu0 0
    %293 = vmatprep.subr.bf16.mxu0 0
    %294 = vmatpush1.bf16.msra.mxu0 0
    %295 = vmatprep.subr.bf16.mxu0 0
    %296 = vmatpush1.bf16.msra.mxu0 0
    %297 = vmatprep.subr.bf16.mxu0 0
    %298 = vmatpush1.bf16.msra.mxu0 0
    %299 = vmatprep.subr.bf16.mxu0 0
    %300 = vmatpush1.bf16.msra.mxu0 0
    %301 = vmatprep.subr.bf16.mxu0 0
    %302 = vmatpush1.bf16.msra.mxu0 0
    %303 = vmatprep.mubr.bf16.mxu0 0
    %304 = vmatmul.mubr.bf16.gmra.mrb[0].mxu0 %v187
    %v305 = vpop.f32.mrb[0].mxu0
    %v306 = vadd.f32 %v84, %v305
    %v307 = vpop.f32.mrb[0].mxu0
    %v308 = vadd.f32 %v88, %v307
    %v309 = vpop.f32.mrb[0].mxu0
    %v310 = vpop.f32.mrb[0].mxu0
    %311 = vdwg.mxu0
    %312 = vmatprep.subr.bf16.mxu0 %v160
    %313 = vmatpush1.bf16.msra.mxu0 %v159
    %314 = vmatprep.subr.bf16.mxu0 %v168
    %315 = vmatpush1.bf16.msra.mxu0 %v167
    %316 = vmatprep.subr.bf16.mxu0 0
    %317 = vmatpush1.bf16.msra.mxu0 0
    %318 = vmatprep.subr.bf16.mxu0 0
    %319 = vmatpush1.bf16.msra.mxu0 0
    %320 = vmatprep.subr.bf16.mxu0 0
    %321 = vmatpush1.bf16.msra.mxu0 0
    %322 = vmatprep.subr.bf16.mxu0 0
    %323 = vmatpush1.bf16.msra.mxu0 0
    %324 = vmatprep.subr.bf16.mxu0 0
    %325 = vmatpush1.bf16.msra.mxu0 0
    %326 = vmatprep.subr.bf16.mxu0 0
    %327 = vmatpush1.bf16.msra.mxu0 0
    %328 = vmatprep.subr.bf16.mxu0 0
    %329 = vmatpush1.bf16.msra.mxu0 0
    %330 = vmatprep.subr.bf16.mxu0 0
    %331 = vmatpush1.bf16.msra.mxu0 0
    %332 = vmatprep.subr.bf16.mxu0 0
    %333 = vmatpush1.bf16.msra.mxu0 0
    %334 = vmatprep.subr.bf16.mxu0 0
    %335 = vmatpush1.bf16.msra.mxu0 0
    %336 = vmatprep.subr.bf16.mxu0 0
    %337 = vmatpush1.bf16.msra.mxu0 0
    %338 = vmatprep.subr.bf16.mxu0 0
    %339 = vmatpush1.bf16.msra.mxu0 0
    %340 = vmatprep.subr.bf16.mxu0 0
    %341 = vmatpush1.bf16.msra.mxu0 0
    %342 = vmatprep.subr.bf16.mxu0 0
    %343 = vmatpush1.bf16.msra.mxu0 0
    %344 = vmatprep.mubr.bf16.mxu0 0
    %345 = vmatmul.mubr.bf16.gmra.mrb[0].mxu0 %v187
    %v346 = vpop.f32.mrb[0].mxu0
    %v347 = vadd.f32 %v92, %v346
    %v348 = vpop.f32.mrb[0].mxu0
    %v349 = vadd.f32 %v96, %v348
    %v350 = vpop.f32.mrb[0].mxu0
    %v351 = vpop.f32.mrb[0].mxu0
    %352 = vdwg.mxu0
    %v353 = vmul.f32 %v224, 0.01
    %v354 = vmul.f32 %v226, 0.01
    %v355 = vmul.f32 %v265, 0.01
    %v356 = vmul.f32 %v267, 0.01
    %v357 = vmul.f32 %v306, 0.01
    %v358 = vmul.f32 %v308, 0.01
    %v359 = vmul.f32 %v347, 0.01
    %v360 = vmul.f32 %v349, 0.01
    %v361 = vmax.f32 %v224, %v353
    %v362 = vmax.f32 %v226, %v354
    %v363 = vmax.f32 %v265, %v355
    %v364 = vmax.f32 %v267, %v356
    %v365 = vmax.f32 %v306, %v357
    %v366 = vmax.f32 %v308, %v358
    %v367 = vmax.f32 %v347, %v359
    %v368 = vmax.f32 %v349, %v360
    %v369 = vpack.c.bf16 %v361, %v361
    %v370 = vpack.c.bf16 %v362, %v362
    %v371 = vpack.c.bf16 %v363, %v363
    %v372 = vpack.c.bf16 %v364, %v364
    %v373 = vpack.c.bf16 %v365, %v365
    %v374 = vpack.c.bf16 %v366, %v366
    %v375 = vpack.c.bf16 %v367, %v367
    %v376 = vpack.c.bf16 %v368, %v368
    %v377 = vld [vmem:[%s3] sm:$0xf]
    %v378 = vld [vmem:[%s3 + $0x4] sm:$0xf]
    %v379 = vld [vmem:[%s3 + $0x8] sm:$0xf]
    %v380 = vld [vmem:[%s3 + $0xc] sm:$0xf]
    %v381 = vld [vmem:[%s3 + $0x10] sm:$0xf]
    %v382 = vld [vmem:[%s3 + $0x14] sm:$0xf]
    %v383 = vld [vmem:[%s3 + $0x18] sm:$0xf]
    %v384 = vld [vmem:[%s3 + $0x1c] sm:$0xf]
    %v385 = vld [vmem:[%s3 + $0x20] sm:$0xf]
    %v386 = vld [vmem:[%s3 + $0x24] sm:$0xf]
    %v387 = vld [vmem:[%s3 + $0x28] sm:$0xf]
    %v388 = vld [vmem:[%s3 + $0x2c] sm:$0xf]
    %v389 = vld [vmem:[%s3 + $0x30] sm:$0xf]
    %v390 = vld [vmem:[%s3 + $0x34] sm:$0xf]
    %v391 = vld [vmem:[%s3 + $0x38] sm:$0xf]
    %v392 = vld [vmem:[%s3 + $0x3c] sm:$0xf]
    %v393 = vld [vmem:[%s3 + $0x40] sm:$0xf]
    %v394 = vld [vmem:[%s3 + $0x44] sm:$0xf]
    %v395 = vld [vmem:[%s3 + $0x48] sm:$0xf]
    %v396 = vld [vmem:[%s3 + $0x4c] sm:$0xf]
    %v397 = vld [vmem:[%s3 + $0x50] sm:$0xf]
    %v398 = vld [vmem:[%s3 + $0x54] sm:$0xf]
    %v399 = vld [vmem:[%s3 + $0x58] sm:$0xf]
    %v400 = vld [vmem:[%s3 + $0x5c] sm:$0xf]
    %v401 = vld [vmem:[%s3 + $0x60] sm:$0xf]
    %v402 = vld [vmem:[%s3 + $0x64] sm:$0xf]
    %v403 = vld [vmem:[%s3 + $0x68] sm:$0xf]
    %v404 = vld [vmem:[%s3 + $0x6c] sm:$0xf]
    %v405 = vld [vmem:[%s3 + $0x70] sm:$0xf]
    %v406 = vld [vmem:[%s3 + $0x74] sm:$0xf]
    %v407 = vld [vmem:[%s3 + $0x78] sm:$0xf]
    %v408 = vld [vmem:[%s3 + $0x7c] sm:$0xf]
    %v409 = vld [vmem:[%s3 + $0x80] sm:$0xf]
    %v410 = vld [vmem:[%s3 + $0x84] sm:$0xf]
    %v411 = vld [vmem:[%s3 + $0x88] sm:$0xf]
    %v412 = vld [vmem:[%s3 + $0x8c] sm:$0xf]
    %v413 = vld [vmem:[%s3 + $0x90] sm:$0xf]
    %v414 = vld [vmem:[%s3 + $0x94] sm:$0xf]
    %v415 = vld [vmem:[%s3 + $0x98] sm:$0xf]
    %v416 = vld [vmem:[%s3 + $0x9c] sm:$0xf]
    %v417 = vld [vmem:[%s3 + $0xa0] sm:$0xf]
    %v418 = vld [vmem:[%s3 + $0xa4] sm:$0xf]
    %v419 = vld [vmem:[%s3 + $0xa8] sm:$0xf]
    %v420 = vld [vmem:[%s3 + $0xac] sm:$0xf]
    %v421 = vld [vmem:[%s3 + $0xb0] sm:$0xf]
    %v422 = vld [vmem:[%s3 + $0xb4] sm:$0xf]
    %v423 = vld [vmem:[%s3 + $0xb8] sm:$0xf]
    %v424 = vld [vmem:[%s3 + $0xbc] sm:$0xf]
    %v425 = vld [vmem:[%s3 + $0xc0] sm:$0xf]
    %v426 = vld [vmem:[%s3 + $0xc4] sm:$0xf]
    %v427 = vld [vmem:[%s3 + $0xc8] sm:$0xf]
    %v428 = vld [vmem:[%s3 + $0xcc] sm:$0xf]
    %v429 = vld [vmem:[%s3 + $0xd0] sm:$0xf]
    %v430 = vld [vmem:[%s3 + $0xd4] sm:$0xf]
    %v431 = vld [vmem:[%s3 + $0xd8] sm:$0xf]
    %v432 = vld [vmem:[%s3 + $0xdc] sm:$0xf]
    %v433 = vld [vmem:[%s3 + $0xe0] sm:$0xf]
    %v434 = vld [vmem:[%s3 + $0xe4] sm:$0xf]
    %v435 = vld [vmem:[%s3 + $0xe8] sm:$0xf]
    %v436 = vld [vmem:[%s3 + $0xec] sm:$0xf]
    %v437 = vld [vmem:[%s3 + $0xf0] sm:$0xf]
    %v438 = vld [vmem:[%s3 + $0xf4] sm:$0xf]
    %v439 = vld [vmem:[%s3 + $0xf8] sm:$0xf]
    %v440 = vld [vmem:[%s3 + $0xfc] sm:$0xf]
    %v441 = vld [vmem:[%s3 + $0x100] sm:$0xf]
    %v442 = vld [vmem:[%s3 + $0x104] sm:$0xf]
    %v443 = vld [vmem:[%s3 + $0x108] sm:$0xf]
    %v444 = vld [vmem:[%s3 + $0x10c] sm:$0xf]
    %v445 = vld [vmem:[%s3 + $0x110] sm:$0xf]
    %v446 = vld [vmem:[%s3 + $0x114] sm:$0xf]
    %v447 = vld [vmem:[%s3 + $0x118] sm:$0xf]
    %v448 = vld [vmem:[%s3 + $0x11c] sm:$0xf]
    %v449 = vld [vmem:[%s3 + $0x120] sm:$0xf]
    %v450 = vld [vmem:[%s3 + $0x124] sm:$0xf]
    %v451 = vld [vmem:[%s3 + $0x128] sm:$0xf]
    %v452 = vld [vmem:[%s3 + $0x12c] sm:$0xf]
    %v453 = vld [vmem:[%s3 + $0x130] sm:$0xf]
    %v454 = vld [vmem:[%s3 + $0x134] sm:$0xf]
    %v455 = vld [vmem:[%s3 + $0x138] sm:$0xf]
    %v456 = vld [vmem:[%s3 + $0x13c] sm:$0xf]
    %v457 = vld [vmem:[%s3 + $0x140] sm:$0xf]
    %v458 = vld [vmem:[%s3 + $0x144] sm:$0xf]
    %v459 = vld [vmem:[%s3 + $0x148] sm:$0xf]
    %v460 = vld [vmem:[%s3 + $0x14c] sm:$0xf]
    %v461 = vld [vmem:[%s3 + $0x150] sm:$0xf]
    %v462 = vld [vmem:[%s3 + $0x154] sm:$0xf]
    %v463 = vld [vmem:[%s3 + $0x158] sm:$0xf]
    %v464 = vld [vmem:[%s3 + $0x15c] sm:$0xf]
    %v465 = vld [vmem:[%s3 + $0x160] sm:$0xf]
    %v466 = vld [vmem:[%s3 + $0x164] sm:$0xf]
    %v467 = vld [vmem:[%s3 + $0x168] sm:$0xf]
    %v468 = vld [vmem:[%s3 + $0x16c] sm:$0xf]
    %v469 = vld [vmem:[%s3 + $0x170] sm:$0xf]
    %v470 = vld [vmem:[%s3 + $0x174] sm:$0xf]
    %v471 = vld [vmem:[%s3 + $0x178] sm:$0xf]
    %v472 = vld [vmem:[%s3 + $0x17c] sm:$0xf]
    %v473 = vld [vmem:[%s3 + $0x180] sm:$0xf]
    %v474 = vld [vmem:[%s3 + $0x184] sm:$0xf]
    %v475 = vld [vmem:[%s3 + $0x188] sm:$0xf]
    %v476 = vld [vmem:[%s3 + $0x18c] sm:$0xf]
    %v477 = vld [vmem:[%s3 + $0x190] sm:$0xf]
    %v478 = vld [vmem:[%s3 + $0x194] sm:$0xf]
    %v479 = vld [vmem:[%s3 + $0x198] sm:$0xf]
    %v480 = vld [vmem:[%s3 + $0x19c] sm:$0xf]
    %v481 = vld [vmem:[%s3 + $0x1a0] sm:$0xf]
    %v482 = vld [vmem:[%s3 + $0x1a4] sm:$0xf]
    %v483 = vld [vmem:[%s3 + $0x1a8] sm:$0xf]
    %v484 = vld [vmem:[%s3 + $0x1ac] sm:$0xf]
    %v485 = vld [vmem:[%s3 + $0x1b0] sm:$0xf]
    %v486 = vld [vmem:[%s3 + $0x1b4] sm:$0xf]
    %v487 = vld [vmem:[%s3 + $0x1b8] sm:$0xf]
    %v488 = vld [vmem:[%s3 + $0x1bc] sm:$0xf]
    %v489 = vld [vmem:[%s3 + $0x1c0] sm:$0xf]
    %v490 = vld [vmem:[%s3 + $0x1c4] sm:$0xf]
    %v491 = vld [vmem:[%s3 + $0x1c8] sm:$0xf]
    %v492 = vld [vmem:[%s3 + $0x1cc] sm:$0xf]
    %v493 = vld [vmem:[%s3 + $0x1d0] sm:$0xf]
    %v494 = vld [vmem:[%s3 + $0x1d4] sm:$0xf]
    %v495 = vld [vmem:[%s3 + $0x1d8] sm:$0xf]
    %v496 = vld [vmem:[%s3 + $0x1dc] sm:$0xf]
    %v497 = vld [vmem:[%s3 + $0x1e0] sm:$0xf]
    %v498 = vld [vmem:[%s3 + $0x1e4] sm:$0xf]
    %v499 = vld [vmem:[%s3 + $0x1e8] sm:$0xf]
    %v500 = vld [vmem:[%s3 + $0x1ec] sm:$0xf]
    %v501 = vld [vmem:[%s3 + $0x1f0] sm:$0xf]
    %v502 = vld [vmem:[%s3 + $0x1f4] sm:$0xf]
    %v503 = vld [vmem:[%s3 + $0x1f8] sm:$0xf]
    %v504 = vld [vmem:[%s3 + $0x1fc] sm:$0xf]
    %v505 = vld [vmem:[%s4] sm:$0x1]
    %v507 = vlaneseq
    %v508 = vshrl.u32 %v507, 7
    %v509 = vsub.s32 0, %v508
    %v510 = vrot.slane %v505, %v509
    %v640 = vunpack.c.l.b16 %v377
    %v641 = vunpack.c.l.b16 %v378
    %v642 = vunpack.c.l.b16 %v379
    %v643 = vunpack.c.l.b16 %v380
    %v644 = vunpack.c.l.b16 %v381
    %v645 = vunpack.c.l.b16 %v382
    %v646 = vunpack.c.l.b16 %v383
    %v647 = vunpack.c.l.b16 %v384
    %v648 = vunpack.c.l.b16 %v385
    %v649 = vunpack.c.l.b16 %v386
    %v650 = vunpack.c.l.b16 %v387
    %v651 = vunpack.c.l.b16 %v388
    %v652 = vunpack.c.l.b16 %v389
    %v653 = vunpack.c.l.b16 %v390
    %v654 = vunpack.c.l.b16 %v391
    %v655 = vunpack.c.l.b16 %v392
    %v656 = vunpack.c.l.b16 %v393
    %v657 = vunpack.c.l.b16 %v394
    %v658 = vunpack.c.l.b16 %v395
    %v659 = vunpack.c.l.b16 %v396
    %v660 = vunpack.c.l.b16 %v397
    %v661 = vunpack.c.l.b16 %v398
    %v662 = vunpack.c.l.b16 %v399
    %v663 = vunpack.c.l.b16 %v400
    %v664 = vunpack.c.l.b16 %v401
    %v665 = vunpack.c.l.b16 %v402
    %v666 = vunpack.c.l.b16 %v403
    %v667 = vunpack.c.l.b16 %v404
    %v668 = vunpack.c.l.b16 %v405
    %v669 = vunpack.c.l.b16 %v406
    %v670 = vunpack.c.l.b16 %v407
    %v671 = vunpack.c.l.b16 %v408
    %v672 = vunpack.c.l.b16 %v409
    %v673 = vunpack.c.l.b16 %v410
    %v674 = vunpack.c.l.b16 %v411
    %v675 = vunpack.c.l.b16 %v412
    %v676 = vunpack.c.l.b16 %v413
    %v677 = vunpack.c.l.b16 %v414
    %v678 = vunpack.c.l.b16 %v415
    %v679 = vunpack.c.l.b16 %v416
    %v680 = vunpack.c.l.b16 %v417
    %v681 = vunpack.c.l.b16 %v418
    %v682 = vunpack.c.l.b16 %v419
    %v683 = vunpack.c.l.b16 %v420
    %v684 = vunpack.c.l.b16 %v421
    %v685 = vunpack.c.l.b16 %v422
    %v686 = vunpack.c.l.b16 %v423
    %v687 = vunpack.c.l.b16 %v424
    %v688 = vunpack.c.l.b16 %v425
    %v689 = vunpack.c.l.b16 %v426
    %v690 = vunpack.c.l.b16 %v427
    %v691 = vunpack.c.l.b16 %v428
    %v692 = vunpack.c.l.b16 %v429
    %v693 = vunpack.c.l.b16 %v430
    %v694 = vunpack.c.l.b16 %v431
    %v695 = vunpack.c.l.b16 %v432
    %v696 = vunpack.c.l.b16 %v433
    %v697 = vunpack.c.l.b16 %v434
    %v698 = vunpack.c.l.b16 %v435
    %v699 = vunpack.c.l.b16 %v436
    %v700 = vunpack.c.l.b16 %v437
    %v701 = vunpack.c.l.b16 %v438
    %v702 = vunpack.c.l.b16 %v439
    %v703 = vunpack.c.l.b16 %v440
    %v704 = vunpack.c.l.b16 %v441
    %v705 = vunpack.c.l.b16 %v442
    %v706 = vunpack.c.l.b16 %v443
    %v707 = vunpack.c.l.b16 %v444
    %v708 = vunpack.c.l.b16 %v445
    %v709 = vunpack.c.l.b16 %v446
    %v710 = vunpack.c.l.b16 %v447
    %v711 = vunpack.c.l.b16 %v448
    %v712 = vunpack.c.l.b16 %v449
    %v713 = vunpack.c.l.b16 %v450
    %v714 = vunpack.c.l.b16 %v451
    %v715 = vunpack.c.l.b16 %v452
    %v716 = vunpack.c.l.b16 %v453
    %v717 = vunpack.c.l.b16 %v454
    %v718 = vunpack.c.l.b16 %v455
    %v719 = vunpack.c.l.b16 %v456
    %v720 = vunpack.c.l.b16 %v457
    %v721 = vunpack.c.l.b16 %v458
    %v722 = vunpack.c.l.b16 %v459
    %v723 = vunpack.c.l.b16 %v460
    %v724 = vunpack.c.l.b16 %v461
    %v725 = vunpack.c.l.b16 %v462
    %v726 = vunpack.c.l.b16 %v463
    %v727 = vunpack.c.l.b16 %v464
    %v728 = vunpack.c.l.b16 %v465
    %v729 = vunpack.c.l.b16 %v466
    %v730 = vunpack.c.l.b16 %v467
    %v731 = vunpack.c.l.b16 %v468
    %v732 = vunpack.c.l.b16 %v469
    %v733 = vunpack.c.l.b16 %v470
    %v734 = vunpack.c.l.b16 %v471
    %v735 = vunpack.c.l.b16 %v472
    %v736 = vunpack.c.l.b16 %v473
    %v737 = vunpack.c.l.b16 %v474
    %v738 = vunpack.c.l.b16 %v475
    %v739 = vunpack.c.l.b16 %v476
    %v740 = vunpack.c.l.b16 %v477
    %v741 = vunpack.c.l.b16 %v478
    %v742 = vunpack.c.l.b16 %v479
    %v743 = vunpack.c.l.b16 %v480
    %v744 = vunpack.c.l.b16 %v481
    %v745 = vunpack.c.l.b16 %v482
    %v746 = vunpack.c.l.b16 %v483
    %v747 = vunpack.c.l.b16 %v484
    %v748 = vunpack.c.l.b16 %v485
    %v749 = vunpack.c.l.b16 %v486
    %v750 = vunpack.c.l.b16 %v487
    %v751 = vunpack.c.l.b16 %v488
    %v752 = vunpack.c.l.b16 %v489
    %v753 = vunpack.c.l.b16 %v490
    %v754 = vunpack.c.l.b16 %v491
    %v755 = vunpack.c.l.b16 %v492
    %v756 = vunpack.c.l.b16 %v493
    %v757 = vunpack.c.l.b16 %v494
    %v758 = vunpack.c.l.b16 %v495
    %v759 = vunpack.c.l.b16 %v496
    %v760 = vunpack.c.l.b16 %v497
    %v761 = vunpack.c.l.b16 %v498
    %v762 = vunpack.c.l.b16 %v499
    %v763 = vunpack.c.l.b16 %v500
    %v764 = vunpack.c.l.b16 %v501
    %v765 = vunpack.c.l.b16 %v502
    %v766 = vunpack.c.l.b16 %v503
    %v767 = vunpack.c.l.b16 %v504
    %v768 = vpack.c.b16 %v641, %v640
    %v769 = vpack.c.b16 %v643, %v642
    %v770 = vpack.c.b16 %v645, %v644
    %v771 = vpack.c.b16 %v647, %v646
    %v772 = vpack.c.b16 %v649, %v648
    %v773 = vpack.c.b16 %v651, %v650
    %v774 = vpack.c.b16 %v653, %v652
    %v775 = vpack.c.b16 %v655, %v654
    %v776 = vpack.c.b16 %v657, %v656
    %v777 = vpack.c.b16 %v659, %v658
    %v778 = vpack.c.b16 %v661, %v660
    %v779 = vpack.c.b16 %v663, %v662
    %v780 = vpack.c.b16 %v665, %v664
    %v781 = vpack.c.b16 %v667, %v666
    %v782 = vpack.c.b16 %v669, %v668
    %v783 = vpack.c.b16 %v671, %v670
    %v784 = vpack.c.b16 %v673, %v672
    %v785 = vpack.c.b16 %v675, %v674
    %v786 = vpack.c.b16 %v677, %v676
    %v787 = vpack.c.b16 %v679, %v678
    %v788 = vpack.c.b16 %v681, %v680
    %v789 = vpack.c.b16 %v683, %v682
    %v790 = vpack.c.b16 %v685, %v684
    %v791 = vpack.c.b16 %v687, %v686
    %v792 = vpack.c.b16 %v689, %v688
    %v793 = vpack.c.b16 %v691, %v690
    %v794 = vpack.c.b16 %v693, %v692
    %v795 = vpack.c.b16 %v695, %v694
    %v796 = vpack.c.b16 %v697, %v696
    %v797 = vpack.c.b16 %v699, %v698
    %v798 = vpack.c.b16 %v701, %v700
    %v799 = vpack.c.b16 %v703, %v702
    %v800 = vpack.c.b16 %v705, %v704
    %v801 = vpack.c.b16 %v707, %v706
    %v802 = vpack.c.b16 %v709, %v708
    %v803 = vpack.c.b16 %v711, %v710
    %v804 = vpack.c.b16 %v713, %v712
    %v805 = vpack.c.b16 %v715, %v714
    %v806 = vpack.c.b16 %v717, %v716
    %v807 = vpack.c.b16 %v719, %v718
    %v808 = vpack.c.b16 %v721, %v720
    %v809 = vpack.c.b16 %v723, %v722
    %v810 = vpack.c.b16 %v725, %v724
    %v811 = vpack.c.b16 %v727, %v726
    %v812 = vpack.c.b16 %v729, %v728
    %v813 = vpack.c.b16 %v731, %v730
    %v814 = vpack.c.b16 %v733, %v732
    %v815 = vpack.c.b16 %v735, %v734
    %v816 = vpack.c.b16 %v737, %v736
    %v817 = vpack.c.b16 %v739, %v738
    %v818 = vpack.c.b16 %v741, %v740
    %v819 = vpack.c.b16 %v743, %v742
    %v820 = vpack.c.b16 %v745, %v744
    %v821 = vpack.c.b16 %v747, %v746
    %v822 = vpack.c.b16 %v749, %v748
    %v823 = vpack.c.b16 %v751, %v750
    %v824 = vpack.c.b16 %v753, %v752
    %v825 = vpack.c.b16 %v755, %v754
    %v826 = vpack.c.b16 %v757, %v756
    %v827 = vpack.c.b16 %v759, %v758
    %v828 = vpack.c.b16 %v761, %v760
    %v829 = vpack.c.b16 %v763, %v762
    %v830 = vpack.c.b16 %v765, %v764
    %v831 = vpack.c.b16 %v767, %v766
    %896 = vmatprep.subr.bf16.mxu0 0
    %897 = vmatpush1.bf16.msra.mxu0 %v768
    %898 = vmatprep.subr.bf16.mxu0 0
    %899 = vmatpush1.bf16.msra.mxu0 %v769
    %900 = vmatprep.subr.bf16.mxu0 0
    %901 = vmatpush1.bf16.msra.mxu0 %v770
    %902 = vmatprep.subr.bf16.mxu0 0
    %903 = vmatpush1.bf16.msra.mxu0 %v771
    %904 = vmatprep.subr.bf16.mxu0 0
    %905 = vmatpush1.bf16.msra.mxu0 %v772
    %906 = vmatprep.subr.bf16.mxu0 0
    %907 = vmatpush1.bf16.msra.mxu0 %v773
    %908 = vmatprep.subr.bf16.mxu0 0
    %909 = vmatpush1.bf16.msra.mxu0 %v774
    %910 = vmatprep.subr.bf16.mxu0 0
    %911 = vmatpush1.bf16.msra.mxu0 %v775
    %912 = vmatprep.subr.bf16.mxu0 0
    %913 = vmatpush1.bf16.msra.mxu0 %v776
    %914 = vmatprep.subr.bf16.mxu0 0
    %915 = vmatpush1.bf16.msra.mxu0 %v777
    %916 = vmatprep.subr.bf16.mxu0 0
    %917 = vmatpush1.bf16.msra.mxu0 %v778
    %918 = vmatprep.subr.bf16.mxu0 0
    %919 = vmatpush1.bf16.msra.mxu0 %v779
    %920 = vmatprep.subr.bf16.mxu0 0
    %921 = vmatpush1.bf16.msra.mxu0 %v780
    %922 = vmatprep.subr.bf16.mxu0 0
    %923 = vmatpush1.bf16.msra.mxu0 %v781
    %924 = vmatprep.subr.bf16.mxu0 0
    %925 = vmatpush1.bf16.msra.mxu0 %v782
    %926 = vmatprep.subr.bf16.mxu0 0
    %927 = vmatpush1.bf16.msra.mxu0 %v783
    %928 = vmatprep.mubr.bf16.mxu0 %v370
    %929 = vmatmul.mubr.bf16.gmra.mrb[0].mxu0 %v369
    %v930 = vpop.f32.mrb[0].mxu0
    %v931 = vadd.f32 %v510, %v930
    %v932 = vpop.f32.mrb[0].mxu0
    %v933 = vpop.f32.mrb[0].mxu0
    %v934 = vpop.f32.mrb[0].mxu0
    %935 = vdwg.mxu0
    %936 = vmatprep.subr.bf16.mxu0 0
    %937 = vmatpush1.bf16.msra.mxu0 %v784
    %938 = vmatprep.subr.bf16.mxu0 0
    %939 = vmatpush1.bf16.msra.mxu0 %v785
    %940 = vmatprep.subr.bf16.mxu0 0
    %941 = vmatpush1.bf16.msra.mxu0 %v786
    %942 = vmatprep.subr.bf16.mxu0 0
    %943 = vmatpush1.bf16.msra.mxu0 %v787
    %944 = vmatprep.subr.bf16.mxu0 0
    %945 = vmatpush1.bf16.msra.mxu0 %v788
    %946 = vmatprep.subr.bf16.mxu0 0
    %947 = vmatpush1.bf16.msra.mxu0 %v789
    %948 = vmatprep.subr.bf16.mxu0 0
    %949 = vmatpush1.bf16.msra.mxu0 %v790
    %950 = vmatprep.subr.bf16.mxu0 0
    %951 = vmatpush1.bf16.msra.mxu0 %v791
    %952 = vmatprep.subr.bf16.mxu0 0
    %953 = vmatpush1.bf16.msra.mxu0 %v792
    %954 = vmatprep.subr.bf16.mxu0 0
    %955 = vmatpush1.bf16.msra.mxu0 %v793
    %956 = vmatprep.subr.bf16.mxu0 0
    %957 = vmatpush1.bf16.msra.mxu0 %v794
    %958 = vmatprep.subr.bf16.mxu0 0
    %959 = vmatpush1.bf16.msra.mxu0 %v795
    %960 = vmatprep.subr.bf16.mxu0 0
    %961 = vmatpush1.bf16.msra.mxu0 %v796
    %962 = vmatprep.subr.bf16.mxu0 0
    %963 = vmatpush1.bf16.msra.mxu0 %v797
    %964 = vmatprep.subr.bf16.mxu0 0
    %965 = vmatpush1.bf16.msra.mxu0 %v798
    %966 = vmatprep.subr.bf16.mxu0 0
    %967 = vmatpush1.bf16.msra.mxu0 %v799
    %968 = vmatprep.mubr.bf16.mxu0 %v372
    %969 = vmatmul.mubr.bf16.gmra.mrb[0].mxu0 %v371
    %v970 = vpop.f32.mrb[0].mxu0
    %v971 = vadd.f32 %v931, %v970
    %v972 = vpop.f32.mrb[0].mxu0
    %v973 = vpop.f32.mrb[0].mxu0
    %v974 = vpop.f32.mrb[0].mxu0
    %975 = vdwg.mxu0
    %976 = vmatprep.subr.bf16.mxu0 0
    %977 = vmatpush1.bf16.msra.mxu0 %v800
    %978 = vmatprep.subr.bf16.mxu0 0
    %979 = vmatpush1.bf16.msra.mxu0 %v801
    %980 = vmatprep.subr.bf16.mxu0 0
    %981 = vmatpush1.bf16.msra.mxu0 %v802
    %982 = vmatprep.subr.bf16.mxu0 0
    %983 = vmatpush1.bf16.msra.mxu0 %v803
    %984 = vmatprep.subr.bf16.mxu0 0
    %985 = vmatpush1.bf16.msra.mxu0 %v804
    %986 = vmatprep.subr.bf16.mxu0 0
    %987 = vmatpush1.bf16.msra.mxu0 %v805
    %988 = vmatprep.subr.bf16.mxu0 0
    %989 = vmatpush1.bf16.msra.mxu0 %v806
    %990 = vmatprep.subr.bf16.mxu0 0
    %991 = vmatpush1.bf16.msra.mxu0 %v807
    %992 = vmatprep.subr.bf16.mxu0 0
    %993 = vmatpush1.bf16.msra.mxu0 %v808
    %994 = vmatprep.subr.bf16.mxu0 0
    %995 = vmatpush1.bf16.msra.mxu0 %v809
    %996 = vmatprep.subr.bf16.mxu0 0
    %997 = vmatpush1.bf16.msra.mxu0 %v810
    %998 = vmatprep.subr.bf16.mxu0 0
    %999 = vmatpush1.bf16.msra.mxu0 %v811
    %1000 = vmatprep.subr.bf16.mxu0 0
    %1001 = vmatpush1.bf16.msra.mxu0 %v812
    %1002 = vmatprep.subr.bf16.mxu0 0
    %1003 = vmatpush1.bf16.msra.mxu0 %v813
    %1004 = vmatprep.subr.bf16.mxu0 0
    %1005 = vmatpush1.bf16.msra.mxu0 %v814
    %1006 = vmatprep.subr.bf16.mxu0 0
    %1007 = vmatpush1.bf16.msra.mxu0 %v815
    %1008 = vmatprep.mubr.bf16.mxu0 %v374
    %1009 = vmatmul.mubr.bf16.gmra.mrb[0].mxu0 %v373
    %v1010 = vpop.f32.mrb[0].mxu0
    %v1011 = vadd.f32 %v971, %v1010
    %v1012 = vpop.f32.mrb[0].mxu0
    %v1013 = vpop.f32.mrb[0].mxu0
    %v1014 = vpop.f32.mrb[0].mxu0
    %1015 = vdwg.mxu0
    %1016 = vmatprep.subr.bf16.mxu0 0
    %1017 = vmatpush1.bf16.msra.mxu0 %v816
    %1018 = vmatprep.subr.bf16.mxu0 0
    %1019 = vmatpush1.bf16.msra.mxu0 %v817
    %1020 = vmatprep.subr.bf16.mxu0 0
    %1021 = vmatpush1.bf16.msra.mxu0 %v818
    %1022 = vmatprep.subr.bf16.mxu0 0
    %1023 = vmatpush1.bf16.msra.mxu0 %v819
    %1024 = vmatprep.subr.bf16.mxu0 0
    %1025 = vmatpush1.bf16.msra.mxu0 %v820
    %1026 = vmatprep.subr.bf16.mxu0 0
    %1027 = vmatpush1.bf16.msra.mxu0 %v821
    %1028 = vmatprep.subr.bf16.mxu0 0
    %1029 = vmatpush1.bf16.msra.mxu0 %v822
    %1030 = vmatprep.subr.bf16.mxu0 0
    %1031 = vmatpush1.bf16.msra.mxu0 %v823
    %1032 = vmatprep.subr.bf16.mxu0 0
    %1033 = vmatpush1.bf16.msra.mxu0 %v824
    %1034 = vmatprep.subr.bf16.mxu0 0
    %1035 = vmatpush1.bf16.msra.mxu0 %v825
    %1036 = vmatprep.subr.bf16.mxu0 0
    %1037 = vmatpush1.bf16.msra.mxu0 %v826
    %1038 = vmatprep.subr.bf16.mxu0 0
    %1039 = vmatpush1.bf16.msra.mxu0 %v827
    %1040 = vmatprep.subr.bf16.mxu0 0
    %1041 = vmatpush1.bf16.msra.mxu0 %v828
    %1042 = vmatprep.subr.bf16.mxu0 0
    %1043 = vmatpush1.bf16.msra.mxu0 %v829
    %1044 = vmatprep.subr.bf16.mxu0 0
    %1045 = vmatpush1.bf16.msra.mxu0 %v830
    %1046 = vmatprep.subr.bf16.mxu0 0
    %1047 = vmatpush1.bf16.msra.mxu0 %v831
    %1048 = vmatprep.mubr.bf16.mxu0 %v376
    %1049 = vmatmul.mubr.bf16.gmra.mrb[0].mxu0 %v375
    %v1050 = vpop.f32.mrb[0].mxu0
    %v1051 = vadd.f32 %v1011, %v1050
    %v1052 = vpop.f32.mrb[0].mxu0
    %v1053 = vpop.f32.mrb[0].mxu0
    %v1054 = vpop.f32.mrb[0].mxu0
    %1055 = vdwg.mxu0
    %v1056 = vmax.f32 %v1051, 0.0
    %v1057 = vmin.f32 %v1051, 0.0
    %v1058 = vmul.f32 %v1057, 1.442695
    %v1059 = vpow.pop %v1058
    %v1060 = vsub.f32 %v1059, 1.0
    %v1061 = vadd.f32 %v1056, %v1060
    %v1062 = vpack.c.bf16 %v1061, %v1061
    %v1063 = vld [vmem:[%s5] sm:$0xff]
    %v1064 = vld [vmem:[%s5 + $0x8] sm:$0xff]
    %v1065 = vld [vmem:[%s5 + $0x10] sm:$0xff]
    %v1066 = vld [vmem:[%s5 + $0x18] sm:$0xff]
    %v1067 = vld [vmem:[%s5 + $0x20] sm:$0xf]
    %v1068 = vld [vmem:[%s5 + $0x24] sm:$0xff]
    %v1069 = vld [vmem:[%s5 + $0x2c] sm:$0xff]
    %v1070 = vld [vmem:[%s5 + $0x34] sm:$0xff]
    %v1071 = vld [vmem:[%s5 + $0x3c] sm:$0xff]
    %v1072 = vld [vmem:[%s5 + $0x44] sm:$0xf]
    %v1073 = vld [vmem:[%s5 + $0x48] sm:$0xff]
    %v1074 = vld [vmem:[%s5 + $0x50] sm:$0xff]
    %v1075 = vld [vmem:[%s5 + $0x58] sm:$0xff]
    %v1076 = vld [vmem:[%s5 + $0x60] sm:$0xff]
    %v1077 = vld [vmem:[%s5 + $0x68] sm:$0xf]
    %v1078 = vld [vmem:[%s5 + $0x6c] sm:$0xff]
    %v1079 = vld [vmem:[%s5 + $0x74] sm:$0xff]
    %v1080 = vld [vmem:[%s5 + $0x7c] sm:$0xff]
    %v1081 = vld [vmem:[%s5 + $0x84] sm:$0xff]
    %v1082 = vld [vmem:[%s5 + $0x8c] sm:$0xf]
    %v1083 = vld [vmem:[%s6] sm:$0xff]
    %v1084 = vld [vmem:[%s6 + $0x8] sm:$0x1]
    %v1087 = vlaneseq
    %v1088 = vshrl.u32 %v1087, 7
    %v1089 = vsub.s32 0, %v1088
    %v1090 = vrot.slane %v1083, %v1089
    %v1091 = vlaneseq
    %v1092 = vshrl.u32 %v1091, 7
    %v1093 = vsub.s32 1, %v1092
    %v1094 = vrot.slane %v1083, %v1093
    %v1095 = vlaneseq
    %v1096 = vshrl.u32 %v1095, 7
    %v1097 = vsub.s32 2, %v1096
    %v1098 = vrot.slane %v1083, %v1097
    %v1099 = vlaneseq
    %v1100 = vshrl.u32 %v1099, 7
    %v1101 = vsub.s32 3, %v1100
    %v1102 = vrot.slane %v1083, %v1101
    %v1103 = vlaneseq
    %v1104 = vshrl.u32 %v1103, 7
    %v1105 = vsub.s32 4, %v1104
    %v1106 = vrot.slane %v1083, %v1105
    %v1107 = vlaneseq
    %v1108 = vshrl.u32 %v1107, 7
    %v1109 = vsub.s32 5, %v1108
    %v1110 = vrot.slane %v1083, %v1109
    %v1111 = vlaneseq
    %v1112 = vshrl.u32 %v1111, 7
    %v1113 = vsub.s32 6, %v1112
    %v1114 = vrot.slane %v1083, %v1113
    %v1115 = vlaneseq
    %v1116 = vshrl.u32 %v1115, 7
    %v1117 = vsub.s32 7, %v1116
    %v1118 = vrot.slane %v1083, %v1117
    %v1119 = vlaneseq
    %v1120 = vshrl.u32 %v1119, 7
    %v1121 = vsub.s32 0, %v1120
    %v1122 = vrot.slane %v1084, %v1121
    %v1152 = vunpack.c.l.b16 %v1063
    %v1153 = vunpack.c.h.b16 %v1063
    %v1154 = vunpack.c.l.b16 %v1064
    %v1155 = vunpack.c.h.b16 %v1064
    %v1156 = vunpack.c.l.b16 %v1065
    %v1157 = vunpack.c.h.b16 %v1065
    %v1158 = vunpack.c.l.b16 %v1066
    %v1159 = vunpack.c.h.b16 %v1066
    %v1160 = vunpack.c.l.b16 %v1067
    %v1161 = vunpack.c.l.b16 %v1068
    %v1162 = vunpack.c.h.b16 %v1068
    %v1163 = vunpack.c.l.b16 %v1069
    %v1164 = vunpack.c.h.b16 %v1069
    %v1165 = vunpack.c.l.b16 %v1070
    %v1166 = vunpack.c.h.b16 %v1070
    %v1167 = vunpack.c.l.b16 %v1071
    %v1168 = vunpack.c.h.b16 %v1071
    %v1169 = vunpack.c.l.b16 %v1072
    %v1170 = vunpack.c.l.b16 %v1073
    %v1171 = vunpack.c.h.b16 %v1073
    %v1172 = vunpack.c.l.b16 %v1074
    %v1173 = vunpack.c.h.b16 %v1074
    %v1174 = vunpack.c.l.b16 %v1075
    %v1175 = vunpack.c.h.b16 %v1075
    %v1176 = vunpack.c.l.b16 %v1076
    %v1177 = vunpack.c.h.b16 %v1076
    %v1178 = vunpack.c.l.b16 %v1077
    %v1179 = vunpack.c.l.b16 %v1078
    %v1180 = vunpack.c.h.b16 %v1078
    %v1181 = vunpack.c.l.b16 %v1079
    %v1182 = vunpack.c.h.b16 %v1079
    %v1183 = vunpack.c.l.b16 %v1080
    %v1184 = vunpack.c.h.b16 %v1080
    %v1185 = vunpack.c.l.b16 %v1081
    %v1186 = vunpack.c.h.b16 %v1081
    %v1187 = vunpack.c.l.b16 %v1082
    %v1188 = vpack.c.b16 %v1161, %v1152
    %v1189 = vpack.c.b16 %v1162, %v1153
    %v1190 = vpack.c.b16 %v1163, %v1154
    %v1191 = vpack.c.b16 %v1164, %v1155
    %v1192 = vpack.c.b16 %v1165, %v1156
    %v1193 = vpack.c.b16 %v1166, %v1157
    %v1194 = vpack.c.b16 %v1167, %v1158
    %v1195 = vpack.c.b16 %v1168, %v1159
    %v1196 = vpack.c.b16 %v1169, %v1160
    %v1197 = vpack.c.b16 %v1179, %v1170
    %v1198 = vpack.c.b16 %v1180, %v1171
    %v1199 = vpack.c.b16 %v1181, %v1172
    %v1200 = vpack.c.b16 %v1182, %v1173
    %v1201 = vpack.c.b16 %v1183, %v1174
    %v1202 = vpack.c.b16 %v1184, %v1175
    %v1203 = vpack.c.b16 %v1185, %v1176
    %v1204 = vpack.c.b16 %v1186, %v1177
    %v1205 = vpack.c.b16 %v1187, %v1178
    %v1225 = vsel %vm185, %v1062, 0
    %1227 = vmatprep.subr.bf16.mxu0 %v1189
    %1228 = vmatpush1.bf16.msra.mxu0 %v1188
    %1229 = vmatprep.subr.bf16.mxu0 %v1198
    %1230 = vmatpush1.bf16.msra.mxu0 %v1197
    %1231 = vmatprep.subr.bf16.mxu0 0
    %1232 = vmatpush1.bf16.msra.mxu0 0
    %1233 = vmatprep.subr.bf16.mxu0 0
    %1234 = vmatpush1.bf16.msra.mxu0 0
    %1235 = vmatprep.subr.bf16.mxu0 0
    %1236 = vmatpush1.bf16.msra.mxu0 0
    %1237 = vmatprep.subr.bf16.mxu0 0
    %1238 = vmatpush1.bf16.msra.mxu0 0
    %1239 = vmatprep.subr.bf16.mxu0 0
    %1240 = vmatpush1.bf16.msra.mxu0 0
    %1241 = vmatprep.subr.bf16.mxu0 0
    %1242 = vmatpush1.bf16.msra.mxu0 0
    %1243 = vmatprep.subr.bf16.mxu0 0
    %1244 = vmatpush1.bf16.msra.mxu0 0
    %1245 = vmatprep.subr.bf16.mxu0 0
    %1246 = vmatpush1.bf16.msra.mxu0 0
    %1247 = vmatprep.subr.bf16.mxu0 0
    %1248 = vmatpush1.bf16.msra.mxu0 0
    %1249 = vmatprep.subr.bf16.mxu0 0
    %1250 = vmatpush1.bf16.msra.mxu0 0
    %1251 = vmatprep.subr.bf16.mxu0 0
    %1252 = vmatpush1.bf16.msra.mxu0 0
    %1253 = vmatprep.subr.bf16.mxu0 0
    %1254 = vmatpush1.bf16.msra.mxu0 0
    %1255 = vmatprep.subr.bf16.mxu0 0
    %1256 = vmatpush1.bf16.msra.mxu0 0
    %1257 = vmatprep.subr.bf16.mxu0 0
    %1258 = vmatpush1.bf16.msra.mxu0 0
    %1259 = vmatprep.mubr.bf16.mxu0 0
    %1260 = vmatmul.mubr.bf16.gmra.mrb[0].mxu0 %v1225
    %v1261 = vpop.f32.mrb[0].mxu0
    %v1262 = vadd.f32 %v1090, %v1261
    %v1263 = vpop.f32.mrb[0].mxu0
    %v1264 = vadd.f32 %v1094, %v1263
    %v1265 = vpop.f32.mrb[0].mxu0
    %v1266 = vpop.f32.mrb[0].mxu0
    %1267 = vdwg.mxu0
    %1268 = vmatprep.subr.bf16.mxu0 %v1191
    %1269 = vmatpush1.bf16.msra.mxu0 %v1190
    %1270 = vmatprep.subr.bf16.mxu0 %v1200
    %1271 = vmatpush1.bf16.msra.mxu0 %v1199
    %1272 = vmatprep.subr.bf16.mxu0 0
    %1273 = vmatpush1.bf16.msra.mxu0 0
    %1274 = vmatprep.subr.bf16.mxu0 0
    %1275 = vmatpush1.bf16.msra.mxu0 0
    %1276 = vmatprep.subr.bf16.mxu0 0
    %1277 = vmatpush1.bf16.msra.mxu0 0
    %1278 = vmatprep.subr.bf16.mxu0 0
    %1279 = vmatpush1.bf16.msra.mxu0 0
    %1280 = vmatprep.subr.bf16.mxu0 0
    %1281 = vmatpush1.bf16.msra.mxu0 0
    %1282 = vmatprep.subr.bf16.mxu0 0
    %1283 = vmatpush1.bf16.msra.mxu0 0
    %1284 = vmatprep.subr.bf16.mxu0 0
    %1285 = vmatpush1.bf16.msra.mxu0 0
    %1286 = vmatprep.subr.bf16.mxu0 0
    %1287 = vmatpush1.bf16.msra.mxu0 0
    %1288 = vmatprep.subr.bf16.mxu0 0
    %1289 = vmatpush1.bf16.msra.mxu0 0
    %1290 = vmatprep.subr.bf16.mxu0 0
    %1291 = vmatpush1.bf16.msra.mxu0 0
    %1292 = vmatprep.subr.bf16.mxu0 0
    %1293 = vmatpush1.bf16.msra.mxu0 0
    %1294 = vmatprep.subr.bf16.mxu0 0
    %1295 = vmatpush1.bf16.msra.mxu0 0
    %1296 = vmatprep.subr.bf16.mxu0 0
    %1297 = vmatpush1.bf16.msra.mxu0 0
    %1298 = vmatprep.subr.bf16.mxu0 0
    %1299 = vmatpush1.bf16.msra.mxu0 0
    %1300 = vmatprep.mubr.bf16.mxu0 0
    %1301 = vmatmul.mubr.bf16.gmra.mrb[0].mxu0 %v1225
    %v1302 = vpop.f32.mrb[0].mxu0
    %v1303 = vadd.f32 %v1098, %v1302
    %v1304 = vpop.f32.mrb[0].mxu0
    %v1305 = vadd.f32 %v1102, %v1304
    %v1306 = vpop.f32.mrb[0].mxu0
    %v1307 = vpop.f32.mrb[0].mxu0
    %1308 = vdwg.mxu0
    %1309 = vmatprep.subr.bf16.mxu0 %v1193
    %1310 = vmatpush1.bf16.msra.mxu0 %v1192
    %1311 = vmatprep.subr.bf16.mxu0 %v1202
    %1312 = vmatpush1.bf16.msra.mxu0 %v1201
    %1313 = vmatprep.subr.bf16.mxu0 0
    %1314 = vmatpush1.bf16.msra.mxu0 0
    %1315 = vmatprep.subr.bf16.mxu0 0
    %1316 = vmatpush1.bf16.msra.mxu0 0
    %1317 = vmatprep.subr.bf16.mxu0 0
    %1318 = vmatpush1.bf16.msra.mxu0 0
    %1319 = vmatprep.subr.bf16.mxu0 0
    %1320 = vmatpush1.bf16.msra.mxu0 0
    %1321 = vmatprep.subr.bf16.mxu0 0
    %1322 = vmatpush1.bf16.msra.mxu0 0
    %1323 = vmatprep.subr.bf16.mxu0 0
    %1324 = vmatpush1.bf16.msra.mxu0 0
    %1325 = vmatprep.subr.bf16.mxu0 0
    %1326 = vmatpush1.bf16.msra.mxu0 0
    %1327 = vmatprep.subr.bf16.mxu0 0
    %1328 = vmatpush1.bf16.msra.mxu0 0
    %1329 = vmatprep.subr.bf16.mxu0 0
    %1330 = vmatpush1.bf16.msra.mxu0 0
    %1331 = vmatprep.subr.bf16.mxu0 0
    %1332 = vmatpush1.bf16.msra.mxu0 0
    %1333 = vmatprep.subr.bf16.mxu0 0
    %1334 = vmatpush1.bf16.msra.mxu0 0
    %1335 = vmatprep.subr.bf16.mxu0 0
    %1336 = vmatpush1.bf16.msra.mxu0 0
    %1337 = vmatprep.subr.bf16.mxu0 0
    %1338 = vmatpush1.bf16.msra.mxu0 0
    %1339 = vmatprep.subr.bf16.mxu0 0
    %1340 = vmatpush1.bf16.msra.mxu0 0
    %1341 = vmatprep.mubr.bf16.mxu0 0
    %1342 = vmatmul.mubr.bf16.gmra.mrb[0].mxu0 %v1225
    %v1343 = vpop.f32.mrb[0].mxu0
    %v1344 = vadd.f32 %v1106, %v1343
    %v1345 = vpop.f32.mrb[0].mxu0
    %v1346 = vadd.f32 %v1110, %v1345
    %v1347 = vpop.f32.mrb[0].mxu0
    %v1348 = vpop.f32.mrb[0].mxu0
    %1349 = vdwg.mxu0
    %1350 = vmatprep.subr.bf16.mxu0 %v1195
    %1351 = vmatpush1.bf16.msra.mxu0 %v1194
    %1352 = vmatprep.subr.bf16.mxu0 %v1204
    %1353 = vmatpush1.bf16.msra.mxu0 %v1203
    %1354 = vmatprep.subr.bf16.mxu0 0
    %1355 = vmatpush1.bf16.msra.mxu0 0
    %1356 = vmatprep.subr.bf16.mxu0 0
    %1357 = vmatpush1.bf16.msra.mxu0 0
    %1358 = vmatprep.subr.bf16.mxu0 0
    %1359 = vmatpush1.bf16.msra.mxu0 0
    %1360 = vmatprep.subr.bf16.mxu0 0
    %1361 = vmatpush1.bf16.msra.mxu0 0
    %1362 = vmatprep.subr.bf16.mxu0 0
    %1363 = vmatpush1.bf16.msra.mxu0 0
    %1364 = vmatprep.subr.bf16.mxu0 0
    %1365 = vmatpush1.bf16.msra.mxu0 0
    %1366 = vmatprep.subr.bf16.mxu0 0
    %1367 = vmatpush1.bf16.msra.mxu0 0
    %1368 = vmatprep.subr.bf16.mxu0 0
    %1369 = vmatpush1.bf16.msra.mxu0 0
    %1370 = vmatprep.subr.bf16.mxu0 0
    %1371 = vmatpush1.bf16.msra.mxu0 0
    %1372 = vmatprep.subr.bf16.mxu0 0
    %1373 = vmatpush1.bf16.msra.mxu0 0
    %1374 = vmatprep.subr.bf16.mxu0 0
    %1375 = vmatpush1.bf16.msra.mxu0 0
    %1376 = vmatprep.subr.bf16.mxu0 0
    %1377 = vmatpush1.bf16.msra.mxu0 0
    %1378 = vmatprep.subr.bf16.mxu0 0
    %1379 = vmatpush1.bf16.msra.mxu0 0
    %1380 = vmatprep.subr.bf16.mxu0 0
    %1381 = vmatpush1.bf16.msra.mxu0 0
    %1382 = vmatprep.mubr.bf16.mxu0 0
    %1383 = vmatmul.mubr.bf16.gmra.mrb[0].mxu0 %v1225
    %v1384 = vpop.f32.mrb[0].mxu0
    %v1385 = vadd.f32 %v1114, %v1384
    %v1386 = vpop.f32.mrb[0].mxu0
    %v1387 = vadd.f32 %v1118, %v1386
    %v1388 = vpop.f32.mrb[0].mxu0
    %v1389 = vpop.f32.mrb[0].mxu0
    %1390 = vdwg.mxu0
    %1391 = vmatprep.subr.bf16.mxu0 0
    %1392 = vmatpush1.bf16.msra.mxu0 %v1196
    %1393 = vmatprep.subr.bf16.mxu0 0
    %1394 = vmatpush1.bf16.msra.mxu0 %v1205
    %1395 = vmatprep.subr.bf16.mxu0 0
    %1396 = vmatpush1.bf16.msra.mxu0 0
    %1397 = vmatprep.subr.bf16.mxu0 0
    %1398 = vmatpush1.bf16.msra.mxu0 0
    %1399 = vmatprep.subr.bf16.mxu0 0
    %1400 = vmatpush1.bf16.msra.mxu0 0
    %1401 = vmatprep.subr.bf16.mxu0 0
    %1402 = vmatpush1.bf16.msra.mxu0 0
    %1403 = vmatprep.subr.bf16.mxu0 0
    %1404 = vmatpush1.bf16.msra.mxu0 0
    %1405 = vmatprep.subr.bf16.mxu0 0
    %1406 = vmatpush1.bf16.msra.mxu0 0
    %1407 = vmatprep.subr.bf16.mxu0 0
    %1408 = vmatpush1.bf16.msra.mxu0 0
    %1409 = vmatprep.subr.bf16.mxu0 0
    %1410 = vmatpush1.bf16.msra.mxu0 0
    %1411 = vmatprep.subr.bf16.mxu0 0
    %1412 = vmatpush1.bf16.msra.mxu0 0
    %1413 = vmatprep.subr.bf16.mxu0 0
    %1414 = vmatpush1.bf16.msra.mxu0 0
    %1415 = vmatprep.subr.bf16.mxu0 0
    %1416 = vmatpush1.bf16.msra.mxu0 0
    %1417 = vmatprep.subr.bf16.mxu0 0
    %1418 = vmatpush1.bf16.msra.mxu0 0
    %1419 = vmatprep.subr.bf16.mxu0 0
    %1420 = vmatpush1.bf16.msra.mxu0 0
    %1421 = vmatprep.subr.bf16.mxu0 0
    %1422 = vmatpush1.bf16.msra.mxu0 0
    %1423 = vmatprep.mubr.bf16.mxu0 0
    %1424 = vmatmul.mubr.bf16.gmra.mrb[0].mxu0 %v1225
    %v1425 = vpop.f32.mrb[0].mxu0
    %v1426 = vadd.f32 %v1122, %v1425
    %v1427 = vpop.f32.mrb[0].mxu0
    %v1428 = vpop.f32.mrb[0].mxu0
    %v1429 = vpop.f32.mrb[0].mxu0
    %1430 = vdwg.mxu0
    %v1431 = vmul.f32 %v1264, 0.01
    %v1432 = vmul.f32 %v1303, 0.01
    %v1433 = vmul.f32 %v1305, 0.01
    %v1434 = vmul.f32 %v1344, 0.01
    %v1435 = vmul.f32 %v1346, 0.01
    %v1436 = vmul.f32 %v1385, 0.01
    %v1437 = vmul.f32 %v1387, 0.01
    %v1438 = vmul.f32 %v1426, 0.01
    %v1439 = vmax.f32 %v1264, %v1431
    %v1440 = vmax.f32 %v1303, %v1432
    %v1441 = vmax.f32 %v1305, %v1433
    %v1442 = vmax.f32 %v1344, %v1434
    %v1443 = vmax.f32 %v1346, %v1435
    %v1444 = vmax.f32 %v1385, %v1436
    %v1445 = vmax.f32 %v1387, %v1437
    %v1446 = vmax.f32 %v1426, %v1438
    %v1447 = vpack.c.bf16 %v1262, %v1262
    %v1448 = vld [vmem:[%s7] sm:$0xf]
    %v1449 = vld [vmem:[%s7 + $0x4] sm:$0xf]
    %v1450 = vld [vmem:[%s7 + $0x8] sm:$0xf]
    %v1451 = vld [vmem:[%s7 + $0xc] sm:$0xf]
    %v1452 = vld [vmem:[%s7 + $0x10] sm:$0xf]
    %v1453 = vld [vmem:[%s7 + $0x14] sm:$0xf]
    %v1454 = vld [vmem:[%s7 + $0x18] sm:$0xf]
    %v1455 = vld [vmem:[%s7 + $0x1c] sm:$0xf]
    %v1456 = vld [vmem:[%s7 + $0x20] sm:$0xf]
    %v1457 = vld [vmem:[%s7 + $0x24] sm:$0xf]
    %v1458 = vld [vmem:[%s7 + $0x28] sm:$0xf]
    %v1459 = vld [vmem:[%s7 + $0x2c] sm:$0xf]
    %v1460 = vld [vmem:[%s7 + $0x30] sm:$0xf]
    %v1461 = vld [vmem:[%s7 + $0x34] sm:$0xf]
    %v1462 = vld [vmem:[%s7 + $0x38] sm:$0xf]
    %v1463 = vld [vmem:[%s7 + $0x3c] sm:$0xf]
    %v1464 = vld [vmem:[%s8] sm:$0x1]
    %v1466 = vlaneseq
    %v1467 = vshrl.u32 %v1466, 7
    %v1468 = vsub.s32 0, %v1467
    %v1469 = vrot.slane %v1464, %v1468
    %v1487 = vunpack.c.l.b16 %v1448
    %v1488 = vunpack.c.l.b16 %v1449
    %v1489 = vunpack.c.l.b16 %v1450
    %v1490 = vunpack.c.l.b16 %v1451
    %v1491 = vunpack.c.l.b16 %v1452
    %v1492 = vunpack.c.l.b16 %v1453
    %v1493 = vunpack.c.l.b16 %v1454
    %v1494 = vunpack.c.l.b16 %v1455
    %v1495 = vunpack.c.l.b16 %v1456
    %v1496 = vunpack.c.l.b16 %v1457
    %v1497 = vunpack.c.l.b16 %v1458
    %v1498 = vunpack.c.l.b16 %v1459
    %v1499 = vunpack.c.l.b16 %v1460
    %v1500 = vunpack.c.l.b16 %v1461
    %v1501 = vunpack.c.l.b16 %v1462
    %v1502 = vunpack.c.l.b16 %v1463
    %v1503 = vpack.c.b16 %v1488, %v1487
    %v1504 = vpack.c.b16 %v1490, %v1489
    %v1505 = vpack.c.b16 %v1492, %v1491
    %v1506 = vpack.c.b16 %v1494, %v1493
    %v1507 = vpack.c.b16 %v1496, %v1495
    %v1508 = vpack.c.b16 %v1498, %v1497
    %v1509 = vpack.c.b16 %v1500, %v1499
    %v1510 = vpack.c.b16 %v1502, %v1501
    %1519 = vmatprep.subr.bf16.mxu0 0
    %1520 = vmatpush1.bf16.msra.mxu0 %v1503
    %1521 = vmatprep.subr.bf16.mxu0 0
    %1522 = vmatpush1.bf16.msra.mxu0 %v1504
    %1523 = vmatprep.subr.bf16.mxu0 0
    %1524 = vmatpush1.bf16.msra.mxu0 %v1505
    %1525 = vmatprep.subr.bf16.mxu0 0
    %1526 = vmatpush1.bf16.msra.mxu0 %v1506
    %1527 = vmatprep.subr.bf16.mxu0 0
    %1528 = vmatpush1.bf16.msra.mxu0 %v1507
    %1529 = vmatprep.subr.bf16.mxu0 0
    %1530 = vmatpush1.bf16.msra.mxu0 %v1508
    %1531 = vmatprep.subr.bf16.mxu0 0
    %1532 = vmatpush1.bf16.msra.mxu0 %v1509
    %1533 = vmatprep.subr.bf16.mxu0 0
    %1534 = vmatpush1.bf16.msra.mxu0 %v1510
    %1535 = vmatprep.subr.bf16.mxu0 0
    %1536 = vmatpush1.bf16.msra.mxu0 0
    %1537 = vmatprep.subr.bf16.mxu0 0
    %1538 = vmatpush1.bf16.msra.mxu0 0
    %1539 = vmatprep.subr.bf16.mxu0 0
    %1540 = vmatpush1.bf16.msra.mxu0 0
    %1541 = vmatprep.subr.bf16.mxu0 0
    %1542 = vmatpush1.bf16.msra.mxu0 0
    %1543 = vmatprep.subr.bf16.mxu0 0
    %1544 = vmatpush1.bf16.msra.mxu0 0
    %1545 = vmatprep.subr.bf16.mxu0 0
    %1546 = vmatpush1.bf16.msra.mxu0 0
    %1547 = vmatprep.subr.bf16.mxu0 0
    %1548 = vmatpush1.bf16.msra.mxu0 0
    %1549 = vmatprep.subr.bf16.mxu0 0
    %1550 = vmatpush1.bf16.msra.mxu0 0
    %1551 = vmatprep.mubr.bf16.mxu0 0
    %1552 = vmatmul.mubr.bf16.gmra.mrb[0].mxu0 %v1447
    %v1553 = vpop.f32.mrb[0].mxu0
    %v1554 = vadd.f32 %v1469, %v1553
    %v1555 = vpop.f32.mrb[0].mxu0
    %v1556 = vpop.f32.mrb[0].mxu0
    %v1557 = vpop.f32.mrb[0].mxu0
    %1558 = vdwg.mxu0
    %1559 = vmax.xlane.f32.xlu0 %v1554
    %v1560 = vpop.xlane.xlu0 %1559
    %v1561 = vsub.f32 %v1554, %v1560
    %v1562 = vmul.f32 %v1561, 1.442695
    %v1563 = vpow.pop %v1562
    %1564 = vadd.xlane.f32.xlu0 %v1563
    %v1565 = vpop.xlane.xlu0 %1564
    %v1566 = vlog2.pop %v1565
    %v1567 = vmul.f32 %v1566, 0.6931472
    %v1568 = vadd.f32 %v1567, %v1560
    %v1569 = vsub.f32 %v1554, %v1568
    %1570 = vst [vmem:[#allocation3] sm:$0xff] %v1569
    %v1571 = vld [vmem:[%s9] sm:$0xff]
    %v1573 = vlaneseq
    %v1574 = vshrl.u32 %v1573, 7
    %v1575 = vsub.s32 0, %v1574
    %v1576 = vrot.slane %v1571, %v1575
    %v1577 = vlaneseq
    %v1578 = vshrl.u32 %v1577, 7
    %v1579 = vsub.s32 1, %v1578
    %v1580 = vrot.slane %v1571, %v1579
    %v1581 = vlaneseq
    %v1582 = vshrl.u32 %v1581, 7
    %v1583 = vsub.s32 2, %v1582
    %v1584 = vrot.slane %v1571, %v1583
    %v1585 = vlaneseq
    %v1586 = vshrl.u32 %v1585, 7
    %v1587 = vsub.s32 3, %v1586
    %v1588 = vrot.slane %v1571, %v1587
    %v1589 = vlaneseq
    %v1590 = vshrl.u32 %v1589, 7
    %v1591 = vsub.s32 4, %v1590
    %v1592 = vrot.slane %v1571, %v1591
    %v1593 = vlaneseq
    %v1594 = vshrl.u32 %v1593, 7
    %v1595 = vsub.s32 5, %v1594
    %v1596 = vrot.slane %v1571, %v1595
    %v1597 = vlaneseq
    %v1598 = vshrl.u32 %v1597, 7
    %v1599 = vsub.s32 6, %v1598
    %v1600 = vrot.slane %v1571, %v1599
    %v1601 = vlaneseq
    %v1602 = vshrl.u32 %v1601, 7
    %v1603 = vsub.s32 7, %v1602
    %v1604 = vrot.slane %v1571, %v1603
    %v1613 = vmul.f32 %v1439, %v1576
    %v1614 = vmul.f32 %v1440, %v1580
    %v1615 = vmul.f32 %v1441, %v1584
    %v1616 = vmul.f32 %v1442, %v1588
    %v1617 = vmul.f32 %v1443, %v1592
    %v1618 = vmul.f32 %v1444, %v1596
    %v1619 = vmul.f32 %v1445, %v1600
    %v1620 = vmul.f32 %v1446, %v1604
    %v1621 = vadd.f32 %v1613, %v1614
    %v1622 = vadd.f32 %v1621, %v1615
    %v1623 = vadd.f32 %v1622, %v1616
    %v1624 = vadd.f32 %v1623, %v1617
    %v1625 = vadd.f32 %v1624, %v1618
    %v1626 = vadd.f32 %v1625, %v1619
    %v1627 = vadd.f32 %v1626, %v1620
    %1628 = vadd.xlane.f32.xlu0 %v1627
    %v1629 = vpop.xlane.xlu0 %1628
    %v1630 = vld [vmem:[#allocation2] sm:$0x1]
    %v1632 = vlaneseq
    %v1633 = vshrl.u32 %v1632, 7
    %v1634 = vsub.s32 0, %v1633
    %v1635 = vrot.slane %v1630, %v1634
    %v1637 = vadd.f32 %v1629, %v1635
    %1639 = vset.pattern.permute.xlu0 0
    %1640 = vperm.xlu0 %1639, %v1637
    %v1641 = vpop.permute.xlu0 %1640
    %1643 = vst [vmem:[#allocation5] sm:$0xff] %v1641
    // Predicated region
    $region46: #{tpu_custom_call.1} parent=1 // pred_check
      _
    $region47: #{tpu_custom_call.1} parent=1 // pred_check_branch
      %1645 = sbr.rel (0) target = $region49
    $region48: #{tpu_custom_call.1} parent=1 // pred_region
      %s1647 = ssub.s32 128, 64
      %1648 = vsyncadd [#allocation4], %s1647
      %s1649 = sshll.u32 [#allocation3], 4
      %s1650 = int_to_ptr.vmem [resolvable:$true] %s1649
      %1655 = dma.vmem_to_hbm [thread:$0]  %s1650, 64, %s11, [#allocation4], 64, 64, 4
    $region49: #{tpu_custom_call.1} parent=1 // pred_fallthru
      _
    // Predicated region
    $region50: #{tpu_custom_call.1} parent=1 // pred_check
      _
    $region51: #{tpu_custom_call.1} parent=1 // pred_check_branch
      %1657 = sbr.rel (0) target = $region53
    $region52: #{tpu_custom_call.1} parent=1 // pred_region
      %s1659 = ssub.s32 128, 64
      %1660 = vsyncadd [#allocation6], %s1659
      %s1661 = sshll.u32 [#allocation5], 4
      %s1662 = int_to_ptr.vmem [resolvable:$true] %s1661
      %1667 = dma.vmem_to_hbm [thread:$0]  %s1662, 64, %s12, [#allocation6], 64, 64, 4
    $region53: #{tpu_custom_call.1} parent=1 // pred_fallthru
      _
    // Predicated region
    $region54: #{tpu_custom_call.1} parent=1 // pred_check
      _
    $region55: #{tpu_custom_call.1} parent=1 // pred_check_branch
      %1669 = sbr.rel (0) target = $region57
    $region56: #{tpu_custom_call.1} parent=1 // pred_region
      %1670 = dma.done [#allocation4], 128
    $region57: #{tpu_custom_call.1} parent=1 // pred_fallthru
      _
    // Predicated region
    $region58: #{tpu_custom_call.1} parent=1 // pred_check
      _
    $region59: #{tpu_custom_call.1} parent=1 // pred_check_branch
      %1672 = sbr.rel (0) target = $region61
    $region60: #{tpu_custom_call.1} parent=1 // pred_region
      %1673 = dma.done [#allocation6], 128
    $region61: #{tpu_custom_call.1} parent=1 // pred_fallthru
      _
    %1674 = vsyncpa [#allocation4], 1
    %1675 = vsyncpa [#allocation6], 1

</llo_original>
